<compile_context>
chip_gen: v6e
topology: v6e:2x2x1
jax: 0.10.0
libtpu: 0.0.40
codegen_flags: <defaults>
</compile_context>

<pallas_src>
import math

import numpy as np
import jax
import jax.numpy as jnp
from jax.experimental import pallas as pl
from jax.experimental.pallas import tpu as pltpu


# ---------------------------------------------------------------------------
# Deterministic parameter setup (mirrors create_window / gaussian(sigma=1.5)).
# ---------------------------------------------------------------------------
def _gaussian_1d(window_size: int, sigma: float = 1.5) -> np.ndarray:
    g = np.array(
        [math.exp(-((x - window_size // 2) ** 2) / float(2 * sigma ** 2))
         for x in range(window_size)],
        dtype=np.float64,
    )
    return (g / g.sum()).astype(np.float32)


def _band_matrix(n: int, g1d: np.ndarray) -> np.ndarray:
    """Banded matrix M (n x n) s.t. M @ x == 1D 'SAME' zero-padded conv of x."""
    ws = g1d.shape[0]
    pad = ws // 2
    m = np.zeros((n, n), dtype=np.float32)
    for i in range(n):          # output index
        for t in range(ws):     # tap
            k = i + t - pad     # input index
            if 0 <= k < n:
                m[i, k] += g1d[t]
    return m


def _block_diag(m: np.ndarray, reps: int) -> np.ndarray:
    """blockdiag(m, ..., m) — applies m independently to each stacked plane."""
    n = m.shape[0]
    out = np.zeros((reps * n, reps * n), dtype=np.float32)
    for r in range(reps):
        out[r * n:(r + 1) * n, r * n:(r + 1) * n] = m
    return out


def _pick_planes_per_step(n_planes: int, h: int, w: int,
                          target_rows: int = 256,
                          max_block_bytes: int = 2 << 20) -> int:
    """Largest divisor NP of n_planes with NP*H <= target_rows and a small block."""
    best = 1
    for d in range(1, n_planes + 1):
        if n_planes % d:
            continue
        rows = d * h
        if rows <= target_rows and rows * w * 4 <= max_block_bytes:
            best = d
    return best


# ---------------------------------------------------------------------------
# Pallas kernel: NP stacked planes per grid step; every conv is two MXU matmuls.
# ---------------------------------------------------------------------------
def _ssim_kernel(ghbd_ref, gwt_ref, img1_ref, img2_ref, out_ref):
    x1 = img1_ref[...]          # (M, W) = NP planes stacked along sublanes
    x2 = img2_ref[...]
    ghbd = ghbd_ref[...]        # (M, M) block-diagonal banded Gaussian (H-pass)
    gwt = gwt_ref[...]          # (W, W) banded Gaussian, right-multiply (W-pass)

    def blur(p):
        # Separable Gaussian: per-plane H-pass (block-diag) then W-pass — both MXU.
        t = jnp.dot(ghbd, p, preferred_element_type=jnp.float32)
        return jnp.dot(t, gwt, preferred_element_type=jnp.float32)

    # Product planes computed once.
    p11 = x1 * x1
    p22 = x2 * x2
    p12 = x1 * x2

    mu1 = blur(x1)
    mu2 = blur(x2)
    e11 = blur(p11)
    e22 = blur(p22)
    e12 = blur(p12)

    mu1_sq = mu1 * mu1
    mu2_sq = mu2 * mu2
    mu1_mu2 = mu1 * mu2
    sigma1_sq = e11 - mu1_sq
    sigma2_sq = e22 - mu2_sq
    sigma12 = e12 - mu1_mu2

    C1 = 0.01 ** 2
    C2 = 0.03 ** 2
    num = (2.0 * mu1_mu2 + C1) * (2.0 * sigma12 + C2)
    den = (mu1_sq + mu2_sq + C1) * (sigma1_sq + sigma2_sq + C2)
    # Division on the EUP (approx reciprocal) instead of the VALU.
    ssim_map = num * pl.reciprocal(den, approx=True)

    # Per-step partial sum written to this grid step's own output element.
    out_ref[...] = jnp.zeros((1, 1), jnp.float32) + jnp.sum(ssim_map)


# ---------------------------------------------------------------------------
# Wrapper == SSIM(window_size=11, size_average=True, weight=1.0).forward
# ---------------------------------------------------------------------------
def ssim_loss(img1, img2, window_size: int = 11, weight: float = 1.0):
    assert img1.shape == img2.shape
    B, C, H, W = img1.shape
    N = B * C

    g = _gaussian_1d(window_size)
    NP = _pick_planes_per_step(N, H, W)     # planes stacked per grid step
    G = N // NP                              # grid steps
    M = NP * H                               # stacked sublane rows per step

    ghbd = jnp.asarray(_block_diag(_band_matrix(H, g), NP))   # (M, M)
    gwt = jnp.asarray(_band_matrix(W, g).T)                   # (W, W)

    # Free, contiguous reshape: plane (b, c) -> rows [p*H:(p+1)*H] of group g.
    x1 = img1.astype(jnp.float32).reshape(G, M, W)
    x2 = img2.astype(jnp.float32).reshape(G, M, W)

    # VMEM budget: double-buffered image blocks + banded matrices + temporaries.
    need = 4 * (2 * 2 * M * W + 2 * (M * M + W * W) + 12 * M * W)
    vmem_limit = int(min(64 * 1024 * 1024, max(32 * 1024 * 1024, 2 * need)))

    plane_sums = pl.pallas_call(
        _ssim_kernel,
        out_shape=jax.ShapeDtypeStruct((G, 1, 1), jnp.float32),
        grid_spec=pltpu.PrefetchScalarGridSpec(
            num_scalar_prefetch=0,
            grid=(G,),
            in_specs=[
                pl.BlockSpec((M, M), lambda i: (0, 0)),
                pl.BlockSpec((W, W), lambda i: (0, 0)),
                pl.BlockSpec((None, M, W), lambda i: (i, 0, 0)),
                pl.BlockSpec((None, M, W), lambda i: (i, 0, 0)),
            ],
            # Leading dim squeezed: kernel sees a (1, 1) output block.
            out_specs=pl.BlockSpec((None, 1, 1), lambda i: (i, 0, 0)),
        ),
        compiler_params=pltpu.CompilerParams(
            dimension_semantics=("parallel",),
            vmem_limit_bytes=vmem_limit),
    )(ghbd, gwt, x1, x2)

    ssim_mean = jnp.sum(plane_sums) / float(N * H * W)   # size_average=True
    return (1.0 - ssim_mean) * weight


# ---------------------------------------------------------------------------
# Pure-JAX reference (for correctness check only).
# ---------------------------------------------------------------------------
def _ssim_loss_ref(img1, img2, window_size: int = 11, weight: float = 1.0):
    B, C, H, W = img1.shape
    pad = window_size // 2
    g = jnp.asarray(_gaussian_1d(window_size))
    w2d = jnp.outer(g, g)
    filt = jnp.broadcast_to(w2d, (C, 1, window_size, window_size))  # OIHW, groups=C

    def conv(x):
        return jax.lax.conv_general_dilated(
            x, filt, window_strides=(1, 1), padding=[(pad, pad), (pad, pad)],
            dimension_numbers=("NCHW", "OIHW", "NCHW"), feature_group_count=C,
            precision=jax.lax.Precision.HIGHEST)

    mu1, mu2 = conv(img1), conv(img2)
    mu1_sq, mu2_sq, mu1_mu2 = mu1 * mu1, mu2 * mu2, mu1 * mu2
    sigma1_sq = conv(img1 * img1) - mu1_sq
    sigma2_sq = conv(img2 * img2) - mu2_sq
    sigma12 = conv(img1 * img2) - mu1_mu2
    C1, C2 = 0.01 ** 2, 0.03 ** 2
    ssim_map = ((2 * mu1_mu2 + C1) * (2 * sigma12 + C2)) / (
        (mu1_sq + mu2_sq + C1) * (sigma1_sq + sigma2_sq + C2))
    return (1.0 - jnp.mean(ssim_map)) * weight


if __name__ == "__main__":
    key = jax.random.PRNGKey(0)
    k1, k2 = jax.random.split(key)
    B, C, H, W = 2, 4, 16, 16
    img1 = jax.random.uniform(k1, (B, C, H, W), dtype=jnp.float32)
    img2 = jax.random.uniform(k2, (B, C, H, W), dtype=jnp.float32)

    loss = ssim_loss(img1, img2, window_size=11, weight=1.0)
    loss = jax.block_until_ready(loss)

    ref = jax.block_until_ready(_ssim_loss_ref(img1, img2))
    np.testing.assert_allclose(np.asarray(loss), np.asarray(ref),
                               rtol=1e-3, atol=1e-3)

    print("KERNEL_OK")
</pallas_src>

<mosaic_0001>
module attributes {stable_mosaic.version = 11 : i64} {
  func.func @_ssim_kernel(%arg0: i32, %arg1: memref<128x128xf32, #tpu.memory_space<vmem>>, %arg2: memref<16x16xf32, #tpu.memory_space<vmem>>, %arg3: memref<1x128x16xf32, #tpu.memory_space<vmem>>, %arg4: memref<1x128x16xf32, #tpu.memory_space<vmem>>, %arg5: memref<1x1x1xf32, #tpu.memory_space<vmem>>) attributes {dimension_semantics = [#tpu.dimension_semantics<parallel>], iteration_bounds = array<i64: 1>, scalar_prefetch = 0 : i64, scratch_operands = 0 : i64, tpu.core_type = #tpu.core_type<tc>, window_params = [{pipeline_mode = #tpu.pipeline_mode<synchronous>, transform_indices = @transform_0, window_bounds = array<i64: 128, 128>}, {pipeline_mode = #tpu.pipeline_mode<synchronous>, transform_indices = @transform_1, window_bounds = array<i64: 16, 16>}, {transform_indices = @transform_2, window_bounds = array<i64: 1, 128, 16>}, {transform_indices = @transform_3, window_bounds = array<i64: 1, 128, 16>}, {transform_indices = @transform_4, window_bounds = array<i64: 1, 1, 1>}]} {
    %c0 = arith.constant 0 : index
    %c0_0 = arith.constant 0 : index
    %c0_1 = arith.constant 0 : index
    %0 = vector.load %arg3[%c0, %c0_0, %c0_1] : memref<1x128x16xf32, #tpu.memory_space<vmem>>, vector<1x128x16xf32>
    %1 = vector.shape_cast %0 : vector<1x128x16xf32> to vector<128x16xf32>
    %c0_2 = arith.constant 0 : index
    %c0_3 = arith.constant 0 : index
    %c0_4 = arith.constant 0 : index
    %2 = vector.load %arg4[%c0_2, %c0_3, %c0_4] : memref<1x128x16xf32, #tpu.memory_space<vmem>>, vector<1x128x16xf32>
    %3 = vector.shape_cast %2 : vector<1x128x16xf32> to vector<128x16xf32>
    %c0_5 = arith.constant 0 : index
    %c0_6 = arith.constant 0 : index
    %4 = vector.load %arg1[%c0_5, %c0_6] : memref<128x128xf32, #tpu.memory_space<vmem>>, vector<128x128xf32>
    %c0_7 = arith.constant 0 : index
    %c0_8 = arith.constant 0 : index
    %5 = vector.load %arg2[%c0_7, %c0_8] : memref<16x16xf32, #tpu.memory_space<vmem>>, vector<16x16xf32>
    %6 = arith.mulf %1, %1 : vector<128x16xf32>
    %7 = arith.mulf %3, %3 : vector<128x16xf32>
    %8 = arith.mulf %1, %3 : vector<128x16xf32>
    %cst = arith.constant dense<0.000000e+00> : vector<128x16xf32>
    %9 = tpu.matmul %4, %1, %cst {dimension_numbers = #tpu.dot_dimension_numbers<[1], [0], [0], [1], [0, 0, 1, 1], [], []>} : vector<128x128xf32>, vector<128x16xf32>, vector<128x16xf32> -> vector<128x16xf32>
    %cst_9 = arith.constant dense<0.000000e+00> : vector<128x16xf32>
    %10 = tpu.matmul %9, %5, %cst_9 {dimension_numbers = #tpu.dot_dimension_numbers<[1], [0], [0], [1], [0, 0, 1, 1], [], []>} : vector<128x16xf32>, vector<16x16xf32>, vector<128x16xf32> -> vector<128x16xf32>
    %cst_10 = arith.constant dense<0.000000e+00> : vector<128x16xf32>
    %11 = tpu.matmul %4, %3, %cst_10 {dimension_numbers = #tpu.dot_dimension_numbers<[1], [0], [0], [1], [0, 0, 1, 1], [], []>} : vector<128x128xf32>, vector<128x16xf32>, vector<128x16xf32> -> vector<128x16xf32>
    %cst_11 = arith.constant dense<0.000000e+00> : vector<128x16xf32>
    %12 = tpu.matmul %11, %5, %cst_11 {dimension_numbers = #tpu.dot_dimension_numbers<[1], [0], [0], [1], [0, 0, 1, 1], [], []>} : vector<128x16xf32>, vector<16x16xf32>, vector<128x16xf32> -> vector<128x16xf32>
    %cst_12 = arith.constant dense<0.000000e+00> : vector<128x16xf32>
    %13 = tpu.matmul %4, %6, %cst_12 {dimension_numbers = #tpu.dot_dimension_numbers<[1], [0], [0], [1], [0, 0, 1, 1], [], []>} : vector<128x128xf32>, vector<128x16xf32>, vector<128x16xf32> -> vector<128x16xf32>
    %cst_13 = arith.constant dense<0.000000e+00> : vector<128x16xf32>
    %14 = tpu.matmul %13, %5, %cst_13 {dimension_numbers = #tpu.dot_dimension_numbers<[1], [0], [0], [1], [0, 0, 1, 1], [], []>} : vector<128x16xf32>, vector<16x16xf32>, vector<128x16xf32> -> vector<128x16xf32>
    %cst_14 = arith.constant dense<0.000000e+00> : vector<128x16xf32>
    %15 = tpu.matmul %4, %7, %cst_14 {dimension_numbers = #tpu.dot_dimension_numbers<[1], [0], [0], [1], [0, 0, 1, 1], [], []>} : vector<128x128xf32>, vector<128x16xf32>, vector<128x16xf32> -> vector<128x16xf32>
    %cst_15 = arith.constant dense<0.000000e+00> : vector<128x16xf32>
    %16 = tpu.matmul %15, %5, %cst_15 {dimension_numbers = #tpu.dot_dimension_numbers<[1], [0], [0], [1], [0, 0, 1, 1], [], []>} : vector<128x16xf32>, vector<16x16xf32>, vector<128x16xf32> -> vector<128x16xf32>
    %cst_16 = arith.constant dense<0.000000e+00> : vector<128x16xf32>
    %17 = tpu.matmul %4, %8, %cst_16 {dimension_numbers = #tpu.dot_dimension_numbers<[1], [0], [0], [1], [0, 0, 1, 1], [], []>} : vector<128x128xf32>, vector<128x16xf32>, vector<128x16xf32> -> vector<128x16xf32>
    %cst_17 = arith.constant dense<0.000000e+00> : vector<128x16xf32>
    %18 = tpu.matmul %17, %5, %cst_17 {dimension_numbers = #tpu.dot_dimension_numbers<[1], [0], [0], [1], [0, 0, 1, 1], [], []>} : vector<128x16xf32>, vector<16x16xf32>, vector<128x16xf32> -> vector<128x16xf32>
    %19 = arith.mulf %10, %10 : vector<128x16xf32>
    %20 = arith.mulf %12, %12 : vector<128x16xf32>
    %21 = arith.mulf %10, %12 : vector<128x16xf32>
    %22 = arith.subf %14, %19 : vector<128x16xf32>
    %23 = arith.subf %16, %20 : vector<128x16xf32>
    %24 = arith.subf %18, %21 : vector<128x16xf32>
    %cst_18 = arith.constant 2.000000e+00 : f32
    %25 = vector.broadcast %cst_18 : f32 to vector<128x16xf32>
    %26 = arith.mulf %25, %21 : vector<128x16xf32>
    %cst_19 = arith.constant 9.99999974E-5 : f32
    %27 = vector.broadcast %cst_19 : f32 to vector<128x16xf32>
    %28 = arith.addf %26, %27 : vector<128x16xf32>
    %cst_20 = arith.constant 2.000000e+00 : f32
    %29 = vector.broadcast %cst_20 : f32 to vector<128x16xf32>
    %30 = arith.mulf %29, %24 : vector<128x16xf32>
    %cst_21 = arith.constant 8.99999984E-4 : f32
    %31 = vector.broadcast %cst_21 : f32 to vector<128x16xf32>
    %32 = arith.addf %30, %31 : vector<128x16xf32>
    %33 = arith.mulf %28, %32 : vector<128x16xf32>
    %34 = arith.addf %19, %20 : vector<128x16xf32>
    %cst_22 = arith.constant 9.99999974E-5 : f32
    %35 = vector.broadcast %cst_22 : f32 to vector<128x16xf32>
    %36 = arith.addf %34, %35 : vector<128x16xf32>
    %37 = arith.addf %22, %23 : vector<128x16xf32>
    %cst_23 = arith.constant 8.99999984E-4 : f32
    %38 = vector.broadcast %cst_23 : f32 to vector<128x16xf32>
    %39 = arith.addf %37, %38 : vector<128x16xf32>
    %40 = arith.mulf %36, %39 : vector<128x16xf32>
    %41 = tpu.reciprocal %40 {approx = true} : vector<128x16xf32> -> vector<128x16xf32>
    %42 = arith.mulf %33, %41 : vector<128x16xf32>
    %cst_24 = arith.constant 0.000000e+00 : f32
    %43 = vector.broadcast %cst_24 : f32 to vector<1x1xf32>
    %44 = vector.shape_cast %42 : vector<128x16xf32> to vector<1x128x16xf32>
    %cst_25 = arith.constant dense<0.000000e+00> : vector<1xf32>
    %45 = vector.multi_reduction <add>, %44, %cst_25 [1, 2] : vector<1x128x16xf32> to vector<1xf32>
    %46 = vector.shape_cast %45 : vector<1xf32> to vector<1x1x1xf32>
    %47 = vector.extract %46[0, 0, 0] : f32 from vector<1x1x1xf32>
    %48 = vector.broadcast %47 : f32 to vector<1x1xf32>
    %49 = arith.addf %43, %48 : vector<1x1xf32>
    %c0_26 = arith.constant 0 : index
    %c0_27 = arith.constant 0 : index
    %c0_28 = arith.constant 0 : index
    %50 = vector.load %arg5[%c0_26, %c0_27, %c0_28] : memref<1x1x1xf32, #tpu.memory_space<vmem>>, vector<1x1x1xf32>
    %51 = vector.shape_cast %50 : vector<1x1x1xf32> to vector<1x1xf32>
    %52 = vector.shape_cast %49 : vector<1x1xf32> to vector<1x1x1xf32>
    tpu.vector_store %arg5[%c0_26, %c0_27, %c0_28], %52 {strides = array<i32>} : memref<1x1x1xf32, #tpu.memory_space<vmem>>, vector<1x1x1xf32>,
    return
  }
  func.func @transform_0(%arg0: i32) -> (i32, i32) {
    %c0_i32 = arith.constant 0 : i32
    %c0_i32_0 = arith.constant 0 : i32
    %c0_i32_1 = arith.constant 0 : i32
    return %c0_i32, %c0_i32_0 : i32, i32
  }
  func.func @transform_1(%arg0: i32) -> (i32, i32) {
    %c0_i32 = arith.constant 0 : i32
    %c0_i32_0 = arith.constant 0 : i32
    %c0_i32_1 = arith.constant 0 : i32
    return %c0_i32, %c0_i32_0 : i32, i32
  }
  func.func @transform_2(%arg0: i32) -> (i32, i32, i32) {
    %c0_i32 = arith.constant 0 : i32
    %c0_i32_0 = arith.constant 0 : i32
    %c0_i32_1 = arith.constant 0 : i32
    return %arg0, %c0_i32, %c0_i32_0 : i32, i32, i32
  }
  func.func @transform_3(%arg0: i32) -> (i32, i32, i32) {
    %c0_i32 = arith.constant 0 : i32
    %c0_i32_0 = arith.constant 0 : i32
    %c0_i32_1 = arith.constant 0 : i32
    return %arg0, %c0_i32, %c0_i32_0 : i32, i32, i32
  }
  func.func @transform_4(%arg0: i32) -> (i32, i32, i32) {
    %c0_i32 = arith.constant 0 : i32
    %c0_i32_0 = arith.constant 0 : i32
    %c0_i32_1 = arith.constant 0 : i32
    return %arg0, %c0_i32, %c0_i32_0 : i32, i32, i32
  }
}

</mosaic_0001>

<llo_original>
// kernel: tpu_custom_call.1
$region0: #{tpu_custom_call.1}
  #allocation0 [shape = 'u32[]', space=smem, size = 0x4, offset = 0x4, fixed_abs, tag = 'smem constant byte address 0x4 - core index']
  #allocation1 [shape = 'u32[144,128]{1,0:T(1,128)}', space=vmem, size = 0x12000, scoped, tag = 'internal scratch']
  %s0 = inlined_call_operand.vmem [shape: f32[128,128], index: 0, kind: input, shape index: {}]
  %s1 = inlined_call_operand.vmem [shape: f32[16,16], index: 1, kind: input, shape index: {}]
  %s2 = inlined_call_operand.vmem [shape: f32[1,128,16], index: 2, kind: input, shape index: {}]
  %s3 = inlined_call_operand.vmem [shape: f32[1,128,16], index: 3, kind: input, shape index: {}]
  %s4 = inlined_call_operand.hbm [shape: f32[1,1,1], index: 4, kind: output, shape index: {}]
  %s5 = sld [smem:[#allocation0]]
  $region26: #{tpu_custom_call.1} parent=0
    _
  %s7 = ssub.s32 1, %s5
  %s8 = scalar_select 0, %s7, %s5
  $region1: #{tpu_custom_call.1} parent=0
    #allocation2 [shape = 'u8[512]{0}', space=vmem, size = 0x400, scoped, tag = 'output window, operand 0, single buffered']
    #allocation3 [shape = 's32[1]{0}', space=sflag, size = 0x4, scoped, tag = 'scoped memory for tpu_custom_call.1']
    %9 = vsyncpa [#allocation3], 0
    // Predicated region
    $region2: #{tpu_custom_call.1} parent=1 // pred_check
      _
    $region3: #{tpu_custom_call.1} parent=1 // pred_check_branch
      %11 = sbr.rel (0) target = $region5
    $region4: #{tpu_custom_call.1} parent=1 // pred_region
      _
    $region5: #{tpu_custom_call.1} parent=1 // pred_fallthru
      _
    // Predicated region
    $region6: #{tpu_custom_call.1} parent=1 // pred_check
      _
    $region7: #{tpu_custom_call.1} parent=1 // pred_check_branch
      %13 = sbr.rel (0) target = $region9
    $region8: #{tpu_custom_call.1} parent=1 // pred_region
      _
    $region9: #{tpu_custom_call.1} parent=1 // pred_fallthru
      _
    // Predicated region
    $region10: #{tpu_custom_call.1} parent=1 // pred_check
      _
    $region11: #{tpu_custom_call.1} parent=1 // pred_check_branch
      %15 = sbr.rel (0) target = $region13
    $region12: #{tpu_custom_call.1} parent=1 // pred_region
      _
    $region13: #{tpu_custom_call.1} parent=1 // pred_fallthru
      _
    // Predicated region
    $region14: #{tpu_custom_call.1} parent=1 // pred_check
      _
    $region15: #{tpu_custom_call.1} parent=1 // pred_check_branch
      %17 = sbr.rel (0) target = $region17
    $region16: #{tpu_custom_call.1} parent=1 // pred_region
      _
    $region17: #{tpu_custom_call.1} parent=1 // pred_fallthru
      _
    %v18 = vld [vmem:[%s2] sm:$0xff]
    %v19 = vld [vmem:[%s2 + $0x8] sm:$0xff]
    %v20 = vld [vmem:[%s2 + $0x10] sm:$0xff]
    %v21 = vld [vmem:[%s2 + $0x18] sm:$0xff]
    %v22 = vld [vmem:[%s2 + $0x20] sm:$0xff]
    %v23 = vld [vmem:[%s2 + $0x28] sm:$0xff]
    %v24 = vld [vmem:[%s2 + $0x30] sm:$0xff]
    %v25 = vld [vmem:[%s2 + $0x38] sm:$0xff]
    %v26 = vld [vmem:[%s2 + $0x40] sm:$0xff]
    %v27 = vld [vmem:[%s2 + $0x48] sm:$0xff]
    %v28 = vld [vmem:[%s2 + $0x50] sm:$0xff]
    %v29 = vld [vmem:[%s2 + $0x58] sm:$0xff]
    %v30 = vld [vmem:[%s2 + $0x60] sm:$0xff]
    %v31 = vld [vmem:[%s2 + $0x68] sm:$0xff]
    %v32 = vld [vmem:[%s2 + $0x70] sm:$0xff]
    %v33 = vld [vmem:[%s2 + $0x78] sm:$0xff]
    %v34 = vld [vmem:[%s3] sm:$0xff]
    %v35 = vld [vmem:[%s3 + $0x8] sm:$0xff]
    %v36 = vld [vmem:[%s3 + $0x10] sm:$0xff]
    %v37 = vld [vmem:[%s3 + $0x18] sm:$0xff]
    %v38 = vld [vmem:[%s3 + $0x20] sm:$0xff]
    %v39 = vld [vmem:[%s3 + $0x28] sm:$0xff]
    %v40 = vld [vmem:[%s3 + $0x30] sm:$0xff]
    %v41 = vld [vmem:[%s3 + $0x38] sm:$0xff]
    %v42 = vld [vmem:[%s3 + $0x40] sm:$0xff]
    %v43 = vld [vmem:[%s3 + $0x48] sm:$0xff]
    %v44 = vld [vmem:[%s3 + $0x50] sm:$0xff]
    %v45 = vld [vmem:[%s3 + $0x58] sm:$0xff]
    %v46 = vld [vmem:[%s3 + $0x60] sm:$0xff]
    %v47 = vld [vmem:[%s3 + $0x68] sm:$0xff]
    %v48 = vld [vmem:[%s3 + $0x70] sm:$0xff]
    %v49 = vld [vmem:[%s3 + $0x78] sm:$0xff]
    %v50 = vld [vmem:[%s0] sm:$0xff]
    %v51 = vld [vmem:[%s0 + $0x8] sm:$0xff]
    %v52 = vld [vmem:[%s0 + $0x10] sm:$0xff]
    %v53 = vld [vmem:[%s0 + $0x18] sm:$0xff]
    %v54 = vld [vmem:[%s0 + $0x20] sm:$0xff]
    %v55 = vld [vmem:[%s0 + $0x28] sm:$0xff]
    %v56 = vld [vmem:[%s0 + $0x30] sm:$0xff]
    %v57 = vld [vmem:[%s0 + $0x38] sm:$0xff]
    %v58 = vld [vmem:[%s0 + $0x40] sm:$0xff]
    %v59 = vld [vmem:[%s0 + $0x48] sm:$0xff]
    %v60 = vld [vmem:[%s0 + $0x50] sm:$0xff]
    %v61 = vld [vmem:[%s0 + $0x58] sm:$0xff]
    %v62 = vld [vmem:[%s0 + $0x60] sm:$0xff]
    %v63 = vld [vmem:[%s0 + $0x68] sm:$0xff]
    %v64 = vld [vmem:[%s0 + $0x70] sm:$0xff]
    %v65 = vld [vmem:[%s0 + $0x78] sm:$0xff]
    %v66 = vld [vmem:[%s1] sm:$0xff]
    %v67 = vld [vmem:[%s1 + $0x8] sm:$0xff]
    %v68 = vmul.f32 %v18, %v18
    %v69 = vmul.f32 %v19, %v19
    %v70 = vmul.f32 %v20, %v20
    %v71 = vmul.f32 %v21, %v21
    %v72 = vmul.f32 %v22, %v22
    %v73 = vmul.f32 %v23, %v23
    %v74 = vmul.f32 %v24, %v24
    %v75 = vmul.f32 %v25, %v25
    %v76 = vmul.f32 %v26, %v26
    %v77 = vmul.f32 %v27, %v27
    %v78 = vmul.f32 %v28, %v28
    %v79 = vmul.f32 %v29, %v29
    %v80 = vmul.f32 %v30, %v30
    %v81 = vmul.f32 %v31, %v31
    %v82 = vmul.f32 %v32, %v32
    %v83 = vmul.f32 %v33, %v33
    %v84 = vmul.f32 %v34, %v34
    %v85 = vmul.f32 %v35, %v35
    %v86 = vmul.f32 %v36, %v36
    %v87 = vmul.f32 %v37, %v37
    %v88 = vmul.f32 %v38, %v38
    %v89 = vmul.f32 %v39, %v39
    %v90 = vmul.f32 %v40, %v40
    %v91 = vmul.f32 %v41, %v41
    %v92 = vmul.f32 %v42, %v42
    %v93 = vmul.f32 %v43, %v43
    %v94 = vmul.f32 %v44, %v44
    %v95 = vmul.f32 %v45, %v45
    %v96 = vmul.f32 %v46, %v46
    %v97 = vmul.f32 %v47, %v47
    %v98 = vmul.f32 %v48, %v48
    %v99 = vmul.f32 %v49, %v49
    %v100 = vmul.f32 %v18, %v34
    %v101 = vmul.f32 %v19, %v35
    %v102 = vmul.f32 %v20, %v36
    %v103 = vmul.f32 %v21, %v37
    %v104 = vmul.f32 %v22, %v38
    %v105 = vmul.f32 %v23, %v39
    %v106 = vmul.f32 %v24, %v40
    %v107 = vmul.f32 %v25, %v41
    %v108 = vmul.f32 %v26, %v42
    %v109 = vmul.f32 %v27, %v43
    %v110 = vmul.f32 %v28, %v44
    %v111 = vmul.f32 %v29, %v45
    %v112 = vmul.f32 %v30, %v46
    %v113 = vmul.f32 %v31, %v47
    %v114 = vmul.f32 %v32, %v48
    %v115 = vmul.f32 %v33, %v49
    %116 = vmatprep.subr.mxu0 0.0
    %117 = vmatpush1.msra.mxu0 %v33
    %118 = vmatprep.subr.mxu0 0.0
    %119 = vmatpush1.msra.mxu0 %v32
    %120 = vmatprep.subr.mxu0 0.0
    %121 = vmatpush1.msra.mxu0 %v31
    %122 = vmatprep.subr.mxu0 0.0
    %123 = vmatpush1.msra.mxu0 %v30
    %124 = vmatprep.subr.mxu0 0.0
    %125 = vmatpush1.msra.mxu0 %v29
    %126 = vmatprep.subr.mxu0 0.0
    %127 = vmatpush1.msra.mxu0 %v28
    %128 = vmatprep.subr.mxu0 0.0
    %129 = vmatpush1.msra.mxu0 %v27
    %130 = vmatprep.subr.mxu0 0.0
    %131 = vmatpush1.msra.mxu0 %v26
    %132 = vmatprep.subr.mxu0 0.0
    %133 = vmatpush1.msra.mxu0 %v25
    %134 = vmatprep.subr.mxu0 0.0
    %135 = vmatpush1.msra.mxu0 %v24
    %136 = vmatprep.subr.mxu0 0.0
    %137 = vmatpush1.msra.mxu0 %v23
    %138 = vmatprep.subr.mxu0 0.0
    %139 = vmatpush1.msra.mxu0 %v22
    %140 = vmatprep.subr.mxu0 0.0
    %141 = vmatpush1.msra.mxu0 %v21
    %142 = vmatprep.subr.mxu0 0.0
    %143 = vmatpush1.msra.mxu0 %v20
    %144 = vmatprep.subr.mxu0 0.0
    %145 = vmatpush1.msra.mxu0 %v19
    %146 = vmatprep.subr.mxu0 0.0
    %147 = vmatpush1.msra.mxu0 %v18
    %148 = vmatprep.subr.mxu0 0.0
    %149 = vmatpush2.msra.mxu0 0.0
    %150 = vmatprep.subr.mxu0 0.0
    %151 = vmatpush2.msra.mxu0 0.0
    %152 = vmatprep.subr.mxu0 0.0
    %153 = vmatpush2.msra.mxu0 0.0
    %154 = vmatprep.subr.mxu0 0.0
    %155 = vmatpush2.msra.mxu0 0.0
    %156 = vmatprep.subr.mxu0 0.0
    %157 = vmatpush2.msra.mxu0 0.0
    %158 = vmatprep.subr.mxu0 0.0
    %159 = vmatpush2.msra.mxu0 0.0
    %160 = vmatprep.subr.mxu0 0.0
    %161 = vmatpush2.msra.mxu0 0.0
    %162 = vmatprep.subr.mxu0 0.0
    %163 = vmatpush2.msra.mxu0 0.0
    %164 = vmatprep.subr.mxu0 0.0
    %165 = vmatpush2.msra.mxu0 0.0
    %166 = vmatprep.subr.mxu0 0.0
    %167 = vmatpush2.msra.mxu0 0.0
    %168 = vmatprep.subr.mxu0 0.0
    %169 = vmatpush2.msra.mxu0 0.0
    %170 = vmatprep.subr.mxu0 0.0
    %171 = vmatpush2.msra.mxu0 0.0
    %172 = vmatprep.subr.mxu0 0.0
    %173 = vmatpush2.msra.mxu0 0.0
    %174 = vmatprep.subr.mxu0 0.0
    %175 = vmatpush2.msra.mxu0 0.0
    %176 = vmatprep.subr.mxu0 0.0
    %177 = vmatpush2.msra.mxu0 0.0
    %178 = vmatprep.subr.mxu0 0.0
    %179 = vmatpush2.msra.mxu0 0.0
    %180 = vmatprep.mubr.f32.mxu0 0.0
    %181 = vmatmul.mubr.f32.gmra.mxu0 %v50
    %v182 = vpop.f32.mrf.mxu0
    %v183 = vadd.f32 0.0, %v182
    %v184 = vpop.f32.mrf.mxu0
    %185 = vmatprep.mubr.f32.mxu0 0.0
    %186 = vmatmul.mubr.f32.gmra.mxu0 %v51
    %v187 = vpop.f32.mrf.mxu0
    %v188 = vadd.f32 0.0, %v187
    %v189 = vpop.f32.mrf.mxu0
    %190 = vmatprep.mubr.f32.mxu0 0.0
    %191 = vmatmul.mubr.f32.gmra.mxu0 %v52
    %v192 = vpop.f32.mrf.mxu0
    %v193 = vadd.f32 0.0, %v192
    %v194 = vpop.f32.mrf.mxu0
    %195 = vmatprep.mubr.f32.mxu0 0.0
    %196 = vmatmul.mubr.f32.gmra.mxu0 %v53
    %v197 = vpop.f32.mrf.mxu0
    %v198 = vadd.f32 0.0, %v197
    %v199 = vpop.f32.mrf.mxu0
    %200 = vmatprep.mubr.f32.mxu0 0.0
    %201 = vmatmul.mubr.f32.gmra.mxu0 %v54
    %v202 = vpop.f32.mrf.mxu0
    %v203 = vadd.f32 0.0, %v202
    %v204 = vpop.f32.mrf.mxu0
    %205 = vmatprep.mubr.f32.mxu0 0.0
    %206 = vmatmul.mubr.f32.gmra.mxu0 %v55
    %v207 = vpop.f32.mrf.mxu0
    %v208 = vadd.f32 0.0, %v207
    %v209 = vpop.f32.mrf.mxu0
    %210 = vmatprep.mubr.f32.mxu0 0.0
    %211 = vmatmul.mubr.f32.gmra.mxu0 %v56
    %v212 = vpop.f32.mrf.mxu0
    %v213 = vadd.f32 0.0, %v212
    %v214 = vpop.f32.mrf.mxu0
    %215 = vmatprep.mubr.f32.mxu0 0.0
    %216 = vmatmul.mubr.f32.gmra.mxu0 %v57
    %v217 = vpop.f32.mrf.mxu0
    %v218 = vadd.f32 0.0, %v217
    %v219 = vpop.f32.mrf.mxu0
    %220 = vmatprep.mubr.f32.mxu0 0.0
    %221 = vmatmul.mubr.f32.gmra.mxu0 %v58
    %v222 = vpop.f32.mrf.mxu0
    %v223 = vadd.f32 0.0, %v222
    %v224 = vpop.f32.mrf.mxu0
    %225 = vmatprep.mubr.f32.mxu0 0.0
    %226 = vmatmul.mubr.f32.gmra.mxu0 %v59
    %v227 = vpop.f32.mrf.mxu0
    %v228 = vadd.f32 0.0, %v227
    %v229 = vpop.f32.mrf.mxu0
    %230 = vmatprep.mubr.f32.mxu0 0.0
    %231 = vmatmul.mubr.f32.gmra.mxu0 %v60
    %v232 = vpop.f32.mrf.mxu0
    %v233 = vadd.f32 0.0, %v232
    %v234 = vpop.f32.mrf.mxu0
    %235 = vmatprep.mubr.f32.mxu0 0.0
    %236 = vmatmul.mubr.f32.gmra.mxu0 %v61
    %v237 = vpop.f32.mrf.mxu0
    %v238 = vadd.f32 0.0, %v237
    %v239 = vpop.f32.mrf.mxu0
    %240 = vmatprep.mubr.f32.mxu0 0.0
    %241 = vmatmul.mubr.f32.gmra.mxu0 %v62
    %v242 = vpop.f32.mrf.mxu0
    %v243 = vadd.f32 0.0, %v242
    %v244 = vpop.f32.mrf.mxu0
    %245 = vmatprep.mubr.f32.mxu0 0.0
    %246 = vmatmul.mubr.f32.gmra.mxu0 %v63
    %v247 = vpop.f32.mrf.mxu0
    %v248 = vadd.f32 0.0, %v247
    %v249 = vpop.f32.mrf.mxu0
    %250 = vmatprep.mubr.f32.mxu0 0.0
    %251 = vmatmul.mubr.f32.gmra.mxu0 %v64
    %v252 = vpop.f32.mrf.mxu0
    %v253 = vadd.f32 0.0, %v252
    %v254 = vpop.f32.mrf.mxu0
    %255 = vmatprep.mubr.f32.mxu0 0.0
    %256 = vmatmul.mubr.f32.gmra.mxu0 %v65
    %v257 = vpop.f32.mrf.mxu0
    %v258 = vadd.f32 0.0, %v257
    %v259 = vpop.f32.mrf.mxu0
    %260 = vdwg.mxu0
    %vm261 = vcmask 130048
    %v263 = vsel %vm261, %v183, 0
    %v266 = vsel %vm261, %v188, 0
    %v269 = vsel %vm261, %v193, 0
    %v272 = vsel %vm261, %v198, 0
    %v275 = vsel %vm261, %v203, 0
    %v278 = vsel %vm261, %v208, 0
    %v281 = vsel %vm261, %v213, 0
    %v284 = vsel %vm261, %v218, 0
    %v287 = vsel %vm261, %v223, 0
    %v290 = vsel %vm261, %v228, 0
    %v293 = vsel %vm261, %v233, 0
    %v296 = vsel %vm261, %v238, 0
    %v299 = vsel %vm261, %v243, 0
    %v302 = vsel %vm261, %v248, 0
    %v305 = vsel %vm261, %v253, 0
    %v308 = vsel %vm261, %v258, 0
    %310 = vmatprep.subr.mxu0 0.0
    %311 = vmatpush1.msra.mxu0 0.0
    %312 = vmatprep.subr.mxu0 0.0
    %313 = vmatpush1.msra.mxu0 0.0
    %314 = vmatprep.subr.mxu0 0.0
    %315 = vmatpush1.msra.mxu0 0.0
    %316 = vmatprep.subr.mxu0 0.0
    %317 = vmatpush1.msra.mxu0 0.0
    %318 = vmatprep.subr.mxu0 0.0
    %319 = vmatpush1.msra.mxu0 0.0
    %320 = vmatprep.subr.mxu0 0.0
    %321 = vmatpush1.msra.mxu0 0.0
    %322 = vmatprep.subr.mxu0 0.0
    %323 = vmatpush1.msra.mxu0 0.0
    %324 = vmatprep.subr.mxu0 0.0
    %325 = vmatpush1.msra.mxu0 0.0
    %326 = vmatprep.subr.mxu0 0.0
    %327 = vmatpush1.msra.mxu0 0.0
    %328 = vmatprep.subr.mxu0 0.0
    %329 = vmatpush1.msra.mxu0 0.0
    %330 = vmatprep.subr.mxu0 0.0
    %331 = vmatpush1.msra.mxu0 0.0
    %332 = vmatprep.subr.mxu0 0.0
    %333 = vmatpush1.msra.mxu0 0.0
    %334 = vmatprep.subr.mxu0 0.0
    %335 = vmatpush1.msra.mxu0 0.0
    %336 = vmatprep.subr.mxu0 0.0
    %337 = vmatpush1.msra.mxu0 0.0
    %338 = vmatprep.subr.mxu0 0.0
    %339 = vmatpush1.msra.mxu0 %v67
    %340 = vmatprep.subr.mxu0 0.0
    %341 = vmatpush1.msra.mxu0 %v66
    %342 = vmatprep.subr.mxu0 0.0
    %343 = vmatpush2.msra.mxu0 0.0
    %344 = vmatprep.subr.mxu0 0.0
    %345 = vmatpush2.msra.mxu0 0.0
    %346 = vmatprep.subr.mxu0 0.0
    %347 = vmatpush2.msra.mxu0 0.0
    %348 = vmatprep.subr.mxu0 0.0
    %349 = vmatpush2.msra.mxu0 0.0
    %350 = vmatprep.subr.mxu0 0.0
    %351 = vmatpush2.msra.mxu0 0.0
    %352 = vmatprep.subr.mxu0 0.0
    %353 = vmatpush2.msra.mxu0 0.0
    %354 = vmatprep.subr.mxu0 0.0
    %355 = vmatpush2.msra.mxu0 0.0
    %356 = vmatprep.subr.mxu0 0.0
    %357 = vmatpush2.msra.mxu0 0.0
    %358 = vmatprep.subr.mxu0 0.0
    %359 = vmatpush2.msra.mxu0 0.0
    %360 = vmatprep.subr.mxu0 0.0
    %361 = vmatpush2.msra.mxu0 0.0
    %362 = vmatprep.subr.mxu0 0.0
    %363 = vmatpush2.msra.mxu0 0.0
    %364 = vmatprep.subr.mxu0 0.0
    %365 = vmatpush2.msra.mxu0 0.0
    %366 = vmatprep.subr.mxu0 0.0
    %367 = vmatpush2.msra.mxu0 0.0
    %368 = vmatprep.subr.mxu0 0.0
    %369 = vmatpush2.msra.mxu0 0.0
    %370 = vmatprep.subr.mxu0 0.0
    %371 = vmatpush2.msra.mxu0 0.0
    %372 = vmatprep.subr.mxu0 0.0
    %373 = vmatpush2.msra.mxu0 0.0
    %374 = vmatprep.mubr.f32.mxu0 0.0
    %375 = vmatmul.mubr.f32.gmra.mxu0 %v263
    %v376 = vpop.f32.mrf.mxu0
    %v377 = vadd.f32 0.0, %v376
    %v378 = vpop.f32.mrf.mxu0
    %379 = vmatprep.mubr.f32.mxu0 0.0
    %380 = vmatmul.mubr.f32.gmra.mxu0 %v266
    %v381 = vpop.f32.mrf.mxu0
    %v382 = vadd.f32 0.0, %v381
    %v383 = vpop.f32.mrf.mxu0
    %384 = vmatprep.mubr.f32.mxu0 0.0
    %385 = vmatmul.mubr.f32.gmra.mxu0 %v269
    %v386 = vpop.f32.mrf.mxu0
    %v387 = vadd.f32 0.0, %v386
    %v388 = vpop.f32.mrf.mxu0
    %389 = vmatprep.mubr.f32.mxu0 0.0
    %390 = vmatmul.mubr.f32.gmra.mxu0 %v272
    %v391 = vpop.f32.mrf.mxu0
    %v392 = vadd.f32 0.0, %v391
    %v393 = vpop.f32.mrf.mxu0
    %394 = vmatprep.mubr.f32.mxu0 0.0
    %395 = vmatmul.mubr.f32.gmra.mxu0 %v275
    %v396 = vpop.f32.mrf.mxu0
    %v397 = vadd.f32 0.0, %v396
    %v398 = vpop.f32.mrf.mxu0
    %399 = vmatprep.mubr.f32.mxu0 0.0
    %400 = vmatmul.mubr.f32.gmra.mxu0 %v278
    %v401 = vpop.f32.mrf.mxu0
    %v402 = vadd.f32 0.0, %v401
    %v403 = vpop.f32.mrf.mxu0
    %404 = vmatprep.mubr.f32.mxu0 0.0
    %405 = vmatmul.mubr.f32.gmra.mxu0 %v281
    %v406 = vpop.f32.mrf.mxu0
    %v407 = vadd.f32 0.0, %v406
    %v408 = vpop.f32.mrf.mxu0
    %409 = vmatprep.mubr.f32.mxu0 0.0
    %410 = vmatmul.mubr.f32.gmra.mxu0 %v284
    %v411 = vpop.f32.mrf.mxu0
    %v412 = vadd.f32 0.0, %v411
    %v413 = vpop.f32.mrf.mxu0
    %414 = vmatprep.mubr.f32.mxu0 0.0
    %415 = vmatmul.mubr.f32.gmra.mxu0 %v287
    %v416 = vpop.f32.mrf.mxu0
    %v417 = vadd.f32 0.0, %v416
    %v418 = vpop.f32.mrf.mxu0
    %419 = vmatprep.mubr.f32.mxu0 0.0
    %420 = vmatmul.mubr.f32.gmra.mxu0 %v290
    %v421 = vpop.f32.mrf.mxu0
    %v422 = vadd.f32 0.0, %v421
    %v423 = vpop.f32.mrf.mxu0
    %424 = vmatprep.mubr.f32.mxu0 0.0
    %425 = vmatmul.mubr.f32.gmra.mxu0 %v293
    %v426 = vpop.f32.mrf.mxu0
    %v427 = vadd.f32 0.0, %v426
    %v428 = vpop.f32.mrf.mxu0
    %429 = vmatprep.mubr.f32.mxu0 0.0
    %430 = vmatmul.mubr.f32.gmra.mxu0 %v296
    %v431 = vpop.f32.mrf.mxu0
    %v432 = vadd.f32 0.0, %v431
    %v433 = vpop.f32.mrf.mxu0
    %434 = vmatprep.mubr.f32.mxu0 0.0
    %435 = vmatmul.mubr.f32.gmra.mxu0 %v299
    %v436 = vpop.f32.mrf.mxu0
    %v437 = vadd.f32 0.0, %v436
    %v438 = vpop.f32.mrf.mxu0
    %439 = vmatprep.mubr.f32.mxu0 0.0
    %440 = vmatmul.mubr.f32.gmra.mxu0 %v302
    %v441 = vpop.f32.mrf.mxu0
    %v442 = vadd.f32 0.0, %v441
    %v443 = vpop.f32.mrf.mxu0
    %444 = vmatprep.mubr.f32.mxu0 0.0
    %445 = vmatmul.mubr.f32.gmra.mxu0 %v305
    %v446 = vpop.f32.mrf.mxu0
    %v447 = vadd.f32 0.0, %v446
    %v448 = vpop.f32.mrf.mxu0
    %449 = vmatprep.mubr.f32.mxu0 0.0
    %450 = vmatmul.mubr.f32.gmra.mxu0 %v308
    %v451 = vpop.f32.mrf.mxu0
    %v452 = vadd.f32 0.0, %v451
    %v453 = vpop.f32.mrf.mxu0
    %454 = vdwg.mxu0
    %455 = vmatprep.subr.mxu0 0.0
    %456 = vmatpush1.msra.mxu0 %v49
    %457 = vmatprep.subr.mxu0 0.0
    %458 = vmatpush1.msra.mxu0 %v48
    %459 = vmatprep.subr.mxu0 0.0
    %460 = vmatpush1.msra.mxu0 %v47
    %461 = vmatprep.subr.mxu0 0.0
    %462 = vmatpush1.msra.mxu0 %v46
    %463 = vmatprep.subr.mxu0 0.0
    %464 = vmatpush1.msra.mxu0 %v45
    %465 = vmatprep.subr.mxu0 0.0
    %466 = vmatpush1.msra.mxu0 %v44
    %467 = vmatprep.subr.mxu0 0.0
    %468 = vmatpush1.msra.mxu0 %v43
    %469 = vmatprep.subr.mxu0 0.0
    %470 = vmatpush1.msra.mxu0 %v42
    %471 = vmatprep.subr.mxu0 0.0
    %472 = vmatpush1.msra.mxu0 %v41
    %473 = vmatprep.subr.mxu0 0.0
    %474 = vmatpush1.msra.mxu0 %v40
    %475 = vmatprep.subr.mxu0 0.0
    %476 = vmatpush1.msra.mxu0 %v39
    %477 = vmatprep.subr.mxu0 0.0
    %478 = vmatpush1.msra.mxu0 %v38
    %479 = vmatprep.subr.mxu0 0.0
    %480 = vmatpush1.msra.mxu0 %v37
    %481 = vmatprep.subr.mxu0 0.0
    %482 = vmatpush1.msra.mxu0 %v36
    %483 = vmatprep.subr.mxu0 0.0
    %484 = vmatpush1.msra.mxu0 %v35
    %485 = vmatprep.subr.mxu0 0.0
    %486 = vmatpush1.msra.mxu0 %v34
    %487 = vmatprep.subr.mxu0 0.0
    %488 = vmatpush2.msra.mxu0 0.0
    %489 = vmatprep.subr.mxu0 0.0
    %490 = vmatpush2.msra.mxu0 0.0
    %491 = vmatprep.subr.mxu0 0.0
    %492 = vmatpush2.msra.mxu0 0.0
    %493 = vmatprep.subr.mxu0 0.0
    %494 = vmatpush2.msra.mxu0 0.0
    %495 = vmatprep.subr.mxu0 0.0
    %496 = vmatpush2.msra.mxu0 0.0
    %497 = vmatprep.subr.mxu0 0.0
    %498 = vmatpush2.msra.mxu0 0.0
    %499 = vmatprep.subr.mxu0 0.0
    %500 = vmatpush2.msra.mxu0 0.0
    %501 = vmatprep.subr.mxu0 0.0
    %502 = vmatpush2.msra.mxu0 0.0
    %503 = vmatprep.subr.mxu0 0.0
    %504 = vmatpush2.msra.mxu0 0.0
    %505 = vmatprep.subr.mxu0 0.0
    %506 = vmatpush2.msra.mxu0 0.0
    %507 = vmatprep.subr.mxu0 0.0
    %508 = vmatpush2.msra.mxu0 0.0
    %509 = vmatprep.subr.mxu0 0.0
    %510 = vmatpush2.msra.mxu0 0.0
    %511 = vmatprep.subr.mxu0 0.0
    %512 = vmatpush2.msra.mxu0 0.0
    %513 = vmatprep.subr.mxu0 0.0
    %514 = vmatpush2.msra.mxu0 0.0
    %515 = vmatprep.subr.mxu0 0.0
    %516 = vmatpush2.msra.mxu0 0.0
    %517 = vmatprep.subr.mxu0 0.0
    %518 = vmatpush2.msra.mxu0 0.0
    %519 = vmatprep.mubr.f32.mxu0 0.0
    %520 = vmatmul.mubr.f32.gmra.mxu0 %v50
    %v521 = vpop.f32.mrf.mxu0
    %v522 = vadd.f32 0.0, %v521
    %v523 = vpop.f32.mrf.mxu0
    %524 = vmatprep.mubr.f32.mxu0 0.0
    %525 = vmatmul.mubr.f32.gmra.mxu0 %v51
    %v526 = vpop.f32.mrf.mxu0
    %v527 = vadd.f32 0.0, %v526
    %v528 = vpop.f32.mrf.mxu0
    %529 = vmatprep.mubr.f32.mxu0 0.0
    %530 = vmatmul.mubr.f32.gmra.mxu0 %v52
    %v531 = vpop.f32.mrf.mxu0
    %v532 = vadd.f32 0.0, %v531
    %v533 = vpop.f32.mrf.mxu0
    %534 = vmatprep.mubr.f32.mxu0 0.0
    %535 = vmatmul.mubr.f32.gmra.mxu0 %v53
    %v536 = vpop.f32.mrf.mxu0
    %v537 = vadd.f32 0.0, %v536
    %v538 = vpop.f32.mrf.mxu0
    %539 = vmatprep.mubr.f32.mxu0 0.0
    %540 = vmatmul.mubr.f32.gmra.mxu0 %v54
    %v541 = vpop.f32.mrf.mxu0
    %v542 = vadd.f32 0.0, %v541
    %v543 = vpop.f32.mrf.mxu0
    %544 = vmatprep.mubr.f32.mxu0 0.0
    %545 = vmatmul.mubr.f32.gmra.mxu0 %v55
    %v546 = vpop.f32.mrf.mxu0
    %v547 = vadd.f32 0.0, %v546
    %v548 = vpop.f32.mrf.mxu0
    %549 = vmatprep.mubr.f32.mxu0 0.0
    %550 = vmatmul.mubr.f32.gmra.mxu0 %v56
    %v551 = vpop.f32.mrf.mxu0
    %v552 = vadd.f32 0.0, %v551
    %v553 = vpop.f32.mrf.mxu0
    %554 = vmatprep.mubr.f32.mxu0 0.0
    %555 = vmatmul.mubr.f32.gmra.mxu0 %v57
    %v556 = vpop.f32.mrf.mxu0
    %v557 = vadd.f32 0.0, %v556
    %v558 = vpop.f32.mrf.mxu0
    %559 = vmatprep.mubr.f32.mxu0 0.0
    %560 = vmatmul.mubr.f32.gmra.mxu0 %v58
    %v561 = vpop.f32.mrf.mxu0
    %v562 = vadd.f32 0.0, %v561
    %v563 = vpop.f32.mrf.mxu0
    %564 = vmatprep.mubr.f32.mxu0 0.0
    %565 = vmatmul.mubr.f32.gmra.mxu0 %v59
    %v566 = vpop.f32.mrf.mxu0
    %v567 = vadd.f32 0.0, %v566
    %v568 = vpop.f32.mrf.mxu0
    %569 = vmatprep.mubr.f32.mxu0 0.0
    %570 = vmatmul.mubr.f32.gmra.mxu0 %v60
    %v571 = vpop.f32.mrf.mxu0
    %v572 = vadd.f32 0.0, %v571
    %v573 = vpop.f32.mrf.mxu0
    %574 = vmatprep.mubr.f32.mxu0 0.0
    %575 = vmatmul.mubr.f32.gmra.mxu0 %v61
    %v576 = vpop.f32.mrf.mxu0
    %v577 = vadd.f32 0.0, %v576
    %v578 = vpop.f32.mrf.mxu0
    %579 = vmatprep.mubr.f32.mxu0 0.0
    %580 = vmatmul.mubr.f32.gmra.mxu0 %v62
    %v581 = vpop.f32.mrf.mxu0
    %v582 = vadd.f32 0.0, %v581
    %v583 = vpop.f32.mrf.mxu0
    %584 = vmatprep.mubr.f32.mxu0 0.0
    %585 = vmatmul.mubr.f32.gmra.mxu0 %v63
    %v586 = vpop.f32.mrf.mxu0
    %v587 = vadd.f32 0.0, %v586
    %v588 = vpop.f32.mrf.mxu0
    %589 = vmatprep.mubr.f32.mxu0 0.0
    %590 = vmatmul.mubr.f32.gmra.mxu0 %v64
    %v591 = vpop.f32.mrf.mxu0
    %v592 = vadd.f32 0.0, %v591
    %v593 = vpop.f32.mrf.mxu0
    %594 = vmatprep.mubr.f32.mxu0 0.0
    %595 = vmatmul.mubr.f32.gmra.mxu0 %v65
    %v596 = vpop.f32.mrf.mxu0
    %v597 = vadd.f32 0.0, %v596
    %v598 = vpop.f32.mrf.mxu0
    %599 = vdwg.mxu0
    %v601 = vsel %vm261, %v522, 0
    %v604 = vsel %vm261, %v527, 0
    %v607 = vsel %vm261, %v532, 0
    %v610 = vsel %vm261, %v537, 0
    %v613 = vsel %vm261, %v542, 0
    %v616 = vsel %vm261, %v547, 0
    %v619 = vsel %vm261, %v552, 0
    %v622 = vsel %vm261, %v557, 0
    %v625 = vsel %vm261, %v562, 0
    %v628 = vsel %vm261, %v567, 0
    %v631 = vsel %vm261, %v572, 0
    %v634 = vsel %vm261, %v577, 0
    %v637 = vsel %vm261, %v582, 0
    %v640 = vsel %vm261, %v587, 0
    %v643 = vsel %vm261, %v592, 0
    %v646 = vsel %vm261, %v597, 0
    %648 = vmatprep.subr.mxu0 0.0
    %649 = vmatpush1.msra.mxu0 0.0
    %650 = vmatprep.subr.mxu0 0.0
    %651 = vmatpush1.msra.mxu0 0.0
    %652 = vmatprep.subr.mxu0 0.0
    %653 = vmatpush1.msra.mxu0 0.0
    %654 = vmatprep.subr.mxu0 0.0
    %655 = vmatpush1.msra.mxu0 0.0
    %656 = vmatprep.subr.mxu0 0.0
    %657 = vmatpush1.msra.mxu0 0.0
    %658 = vmatprep.subr.mxu0 0.0
    %659 = vmatpush1.msra.mxu0 0.0
    %660 = vmatprep.subr.mxu0 0.0
    %661 = vmatpush1.msra.mxu0 0.0
    %662 = vmatprep.subr.mxu0 0.0
    %663 = vmatpush1.msra.mxu0 0.0
    %664 = vmatprep.subr.mxu0 0.0
    %665 = vmatpush1.msra.mxu0 0.0
    %666 = vmatprep.subr.mxu0 0.0
    %667 = vmatpush1.msra.mxu0 0.0
    %668 = vmatprep.subr.mxu0 0.0
    %669 = vmatpush1.msra.mxu0 0.0
    %670 = vmatprep.subr.mxu0 0.0
    %671 = vmatpush1.msra.mxu0 0.0
    %672 = vmatprep.subr.mxu0 0.0
    %673 = vmatpush1.msra.mxu0 0.0
    %674 = vmatprep.subr.mxu0 0.0
    %675 = vmatpush1.msra.mxu0 0.0
    %676 = vmatprep.subr.mxu0 0.0
    %677 = vmatpush1.msra.mxu0 %v67
    %678 = vmatprep.subr.mxu0 0.0
    %679 = vmatpush1.msra.mxu0 %v66
    %680 = vmatprep.subr.mxu0 0.0
    %681 = vmatpush2.msra.mxu0 0.0
    %682 = vmatprep.subr.mxu0 0.0
    %683 = vmatpush2.msra.mxu0 0.0
    %684 = vmatprep.subr.mxu0 0.0
    %685 = vmatpush2.msra.mxu0 0.0
    %686 = vmatprep.subr.mxu0 0.0
    %687 = vmatpush2.msra.mxu0 0.0
    %688 = vmatprep.subr.mxu0 0.0
    %689 = vmatpush2.msra.mxu0 0.0
    %690 = vmatprep.subr.mxu0 0.0
    %691 = vmatpush2.msra.mxu0 0.0
    %692 = vmatprep.subr.mxu0 0.0
    %693 = vmatpush2.msra.mxu0 0.0
    %694 = vmatprep.subr.mxu0 0.0
    %695 = vmatpush2.msra.mxu0 0.0
    %696 = vmatprep.subr.mxu0 0.0
    %697 = vmatpush2.msra.mxu0 0.0
    %698 = vmatprep.subr.mxu0 0.0
    %699 = vmatpush2.msra.mxu0 0.0
    %700 = vmatprep.subr.mxu0 0.0
    %701 = vmatpush2.msra.mxu0 0.0
    %702 = vmatprep.subr.mxu0 0.0
    %703 = vmatpush2.msra.mxu0 0.0
    %704 = vmatprep.subr.mxu0 0.0
    %705 = vmatpush2.msra.mxu0 0.0
    %706 = vmatprep.subr.mxu0 0.0
    %707 = vmatpush2.msra.mxu0 0.0
    %708 = vmatprep.subr.mxu0 0.0
    %709 = vmatpush2.msra.mxu0 0.0
    %710 = vmatprep.subr.mxu0 0.0
    %711 = vmatpush2.msra.mxu0 0.0
    %712 = vmatprep.mubr.f32.mxu0 0.0
    %713 = vmatmul.mubr.f32.gmra.mxu0 %v601
    %v714 = vpop.f32.mrf.mxu0
    %v715 = vadd.f32 0.0, %v714
    %v716 = vpop.f32.mrf.mxu0
    %717 = vmatprep.mubr.f32.mxu0 0.0
    %718 = vmatmul.mubr.f32.gmra.mxu0 %v604
    %v719 = vpop.f32.mrf.mxu0
    %v720 = vadd.f32 0.0, %v719
    %v721 = vpop.f32.mrf.mxu0
    %722 = vmatprep.mubr.f32.mxu0 0.0
    %723 = vmatmul.mubr.f32.gmra.mxu0 %v607
    %v724 = vpop.f32.mrf.mxu0
    %v725 = vadd.f32 0.0, %v724
    %v726 = vpop.f32.mrf.mxu0
    %727 = vmatprep.mubr.f32.mxu0 0.0
    %728 = vmatmul.mubr.f32.gmra.mxu0 %v610
    %v729 = vpop.f32.mrf.mxu0
    %v730 = vadd.f32 0.0, %v729
    %v731 = vpop.f32.mrf.mxu0
    %732 = vmatprep.mubr.f32.mxu0 0.0
    %733 = vmatmul.mubr.f32.gmra.mxu0 %v613
    %v734 = vpop.f32.mrf.mxu0
    %v735 = vadd.f32 0.0, %v734
    %v736 = vpop.f32.mrf.mxu0
    %737 = vmatprep.mubr.f32.mxu0 0.0
    %738 = vmatmul.mubr.f32.gmra.mxu0 %v616
    %v739 = vpop.f32.mrf.mxu0
    %v740 = vadd.f32 0.0, %v739
    %v741 = vpop.f32.mrf.mxu0
    %742 = vmatprep.mubr.f32.mxu0 0.0
    %743 = vmatmul.mubr.f32.gmra.mxu0 %v619
    %v744 = vpop.f32.mrf.mxu0
    %v745 = vadd.f32 0.0, %v744
    %v746 = vpop.f32.mrf.mxu0
    %747 = vmatprep.mubr.f32.mxu0 0.0
    %748 = vmatmul.mubr.f32.gmra.mxu0 %v622
    %v749 = vpop.f32.mrf.mxu0
    %v750 = vadd.f32 0.0, %v749
    %v751 = vpop.f32.mrf.mxu0
    %752 = vmatprep.mubr.f32.mxu0 0.0
    %753 = vmatmul.mubr.f32.gmra.mxu0 %v625
    %v754 = vpop.f32.mrf.mxu0
    %v755 = vadd.f32 0.0, %v754
    %v756 = vpop.f32.mrf.mxu0
    %757 = vmatprep.mubr.f32.mxu0 0.0
    %758 = vmatmul.mubr.f32.gmra.mxu0 %v628
    %v759 = vpop.f32.mrf.mxu0
    %v760 = vadd.f32 0.0, %v759
    %v761 = vpop.f32.mrf.mxu0
    %762 = vmatprep.mubr.f32.mxu0 0.0
    %763 = vmatmul.mubr.f32.gmra.mxu0 %v631
    %v764 = vpop.f32.mrf.mxu0
    %v765 = vadd.f32 0.0, %v764
    %v766 = vpop.f32.mrf.mxu0
    %767 = vmatprep.mubr.f32.mxu0 0.0
    %768 = vmatmul.mubr.f32.gmra.mxu0 %v634
    %v769 = vpop.f32.mrf.mxu0
    %v770 = vadd.f32 0.0, %v769
    %v771 = vpop.f32.mrf.mxu0
    %772 = vmatprep.mubr.f32.mxu0 0.0
    %773 = vmatmul.mubr.f32.gmra.mxu0 %v637
    %v774 = vpop.f32.mrf.mxu0
    %v775 = vadd.f32 0.0, %v774
    %v776 = vpop.f32.mrf.mxu0
    %777 = vmatprep.mubr.f32.mxu0 0.0
    %778 = vmatmul.mubr.f32.gmra.mxu0 %v640
    %v779 = vpop.f32.mrf.mxu0
    %v780 = vadd.f32 0.0, %v779
    %v781 = vpop.f32.mrf.mxu0
    %782 = vmatprep.mubr.f32.mxu0 0.0
    %783 = vmatmul.mubr.f32.gmra.mxu0 %v643
    %v784 = vpop.f32.mrf.mxu0
    %v785 = vadd.f32 0.0, %v784
    %v786 = vpop.f32.mrf.mxu0
    %787 = vmatprep.mubr.f32.mxu0 0.0
    %788 = vmatmul.mubr.f32.gmra.mxu0 %v646
    %v789 = vpop.f32.mrf.mxu0
    %v790 = vadd.f32 0.0, %v789
    %v791 = vpop.f32.mrf.mxu0
    %792 = vdwg.mxu0
    %793 = vmatprep.subr.mxu0 0.0
    %794 = vmatpush1.msra.mxu0 %v83
    %795 = vmatprep.subr.mxu0 0.0
    %796 = vmatpush1.msra.mxu0 %v82
    %797 = vmatprep.subr.mxu0 0.0
    %798 = vmatpush1.msra.mxu0 %v81
    %799 = vmatprep.subr.mxu0 0.0
    %800 = vmatpush1.msra.mxu0 %v80
    %801 = vmatprep.subr.mxu0 0.0
    %802 = vmatpush1.msra.mxu0 %v79
    %803 = vmatprep.subr.mxu0 0.0
    %804 = vmatpush1.msra.mxu0 %v78
    %805 = vmatprep.subr.mxu0 0.0
    %806 = vmatpush1.msra.mxu0 %v77
    %807 = vmatprep.subr.mxu0 0.0
    %808 = vmatpush1.msra.mxu0 %v76
    %809 = vmatprep.subr.mxu0 0.0
    %810 = vmatpush1.msra.mxu0 %v75
    %811 = vmatprep.subr.mxu0 0.0
    %812 = vmatpush1.msra.mxu0 %v74
    %813 = vmatprep.subr.mxu0 0.0
    %814 = vmatpush1.msra.mxu0 %v73
    %815 = vmatprep.subr.mxu0 0.0
    %816 = vmatpush1.msra.mxu0 %v72
    %817 = vmatprep.subr.mxu0 0.0
    %818 = vmatpush1.msra.mxu0 %v71
    %819 = vmatprep.subr.mxu0 0.0
    %820 = vmatpush1.msra.mxu0 %v70
    %821 = vmatprep.subr.mxu0 0.0
    %822 = vmatpush1.msra.mxu0 %v69
    %823 = vmatprep.subr.mxu0 0.0
    %824 = vmatpush1.msra.mxu0 %v68
    %825 = vmatprep.subr.mxu0 0.0
    %826 = vmatpush2.msra.mxu0 0.0
    %827 = vmatprep.subr.mxu0 0.0
    %828 = vmatpush2.msra.mxu0 0.0
    %829 = vmatprep.subr.mxu0 0.0
    %830 = vmatpush2.msra.mxu0 0.0
    %831 = vmatprep.subr.mxu0 0.0
    %832 = vmatpush2.msra.mxu0 0.0
    %833 = vmatprep.subr.mxu0 0.0
    %834 = vmatpush2.msra.mxu0 0.0
    %835 = vmatprep.subr.mxu0 0.0
    %836 = vmatpush2.msra.mxu0 0.0
    %837 = vmatprep.subr.mxu0 0.0
    %838 = vmatpush2.msra.mxu0 0.0
    %839 = vmatprep.subr.mxu0 0.0
    %840 = vmatpush2.msra.mxu0 0.0
    %841 = vmatprep.subr.mxu0 0.0
    %842 = vmatpush2.msra.mxu0 0.0
    %843 = vmatprep.subr.mxu0 0.0
    %844 = vmatpush2.msra.mxu0 0.0
    %845 = vmatprep.subr.mxu0 0.0
    %846 = vmatpush2.msra.mxu0 0.0
    %847 = vmatprep.subr.mxu0 0.0
    %848 = vmatpush2.msra.mxu0 0.0
    %849 = vmatprep.subr.mxu0 0.0
    %850 = vmatpush2.msra.mxu0 0.0
    %851 = vmatprep.subr.mxu0 0.0
    %852 = vmatpush2.msra.mxu0 0.0
    %853 = vmatprep.subr.mxu0 0.0
    %854 = vmatpush2.msra.mxu0 0.0
    %855 = vmatprep.subr.mxu0 0.0
    %856 = vmatpush2.msra.mxu0 0.0
    %857 = vmatprep.mubr.f32.mxu0 0.0
    %858 = vmatmul.mubr.f32.gmra.mxu0 %v50
    %v859 = vpop.f32.mrf.mxu0
    %v860 = vadd.f32 0.0, %v859
    %v861 = vpop.f32.mrf.mxu0
    %862 = vmatprep.mubr.f32.mxu0 0.0
    %863 = vmatmul.mubr.f32.gmra.mxu0 %v51
    %v864 = vpop.f32.mrf.mxu0
    %v865 = vadd.f32 0.0, %v864
    %v866 = vpop.f32.mrf.mxu0
    %867 = vmatprep.mubr.f32.mxu0 0.0
    %868 = vmatmul.mubr.f32.gmra.mxu0 %v52
    %v869 = vpop.f32.mrf.mxu0
    %v870 = vadd.f32 0.0, %v869
    %v871 = vpop.f32.mrf.mxu0
    %872 = vmatprep.mubr.f32.mxu0 0.0
    %873 = vmatmul.mubr.f32.gmra.mxu0 %v53
    %v874 = vpop.f32.mrf.mxu0
    %v875 = vadd.f32 0.0, %v874
    %v876 = vpop.f32.mrf.mxu0
    %877 = vmatprep.mubr.f32.mxu0 0.0
    %878 = vmatmul.mubr.f32.gmra.mxu0 %v54
    %v879 = vpop.f32.mrf.mxu0
    %v880 = vadd.f32 0.0, %v879
    %v881 = vpop.f32.mrf.mxu0
    %882 = vmatprep.mubr.f32.mxu0 0.0
    %883 = vmatmul.mubr.f32.gmra.mxu0 %v55
    %v884 = vpop.f32.mrf.mxu0
    %v885 = vadd.f32 0.0, %v884
    %v886 = vpop.f32.mrf.mxu0
    %887 = vmatprep.mubr.f32.mxu0 0.0
    %888 = vmatmul.mubr.f32.gmra.mxu0 %v56
    %v889 = vpop.f32.mrf.mxu0
    %v890 = vadd.f32 0.0, %v889
    %v891 = vpop.f32.mrf.mxu0
    %892 = vmatprep.mubr.f32.mxu0 0.0
    %893 = vmatmul.mubr.f32.gmra.mxu0 %v57
    %v894 = vpop.f32.mrf.mxu0
    %v895 = vadd.f32 0.0, %v894
    %v896 = vpop.f32.mrf.mxu0
    %897 = vmatprep.mubr.f32.mxu0 0.0
    %898 = vmatmul.mubr.f32.gmra.mxu0 %v58
    %v899 = vpop.f32.mrf.mxu0
    %v900 = vadd.f32 0.0, %v899
    %v901 = vpop.f32.mrf.mxu0
    %902 = vmatprep.mubr.f32.mxu0 0.0
    %903 = vmatmul.mubr.f32.gmra.mxu0 %v59
    %v904 = vpop.f32.mrf.mxu0
    %v905 = vadd.f32 0.0, %v904
    %v906 = vpop.f32.mrf.mxu0
    %907 = vmatprep.mubr.f32.mxu0 0.0
    %908 = vmatmul.mubr.f32.gmra.mxu0 %v60
    %v909 = vpop.f32.mrf.mxu0
    %v910 = vadd.f32 0.0, %v909
    %v911 = vpop.f32.mrf.mxu0
    %912 = vmatprep.mubr.f32.mxu0 0.0
    %913 = vmatmul.mubr.f32.gmra.mxu0 %v61
    %v914 = vpop.f32.mrf.mxu0
    %v915 = vadd.f32 0.0, %v914
    %v916 = vpop.f32.mrf.mxu0
    %917 = vmatprep.mubr.f32.mxu0 0.0
    %918 = vmatmul.mubr.f32.gmra.mxu0 %v62
    %v919 = vpop.f32.mrf.mxu0
    %v920 = vadd.f32 0.0, %v919
    %v921 = vpop.f32.mrf.mxu0
    %922 = vmatprep.mubr.f32.mxu0 0.0
    %923 = vmatmul.mubr.f32.gmra.mxu0 %v63
    %v924 = vpop.f32.mrf.mxu0
    %v925 = vadd.f32 0.0, %v924
    %v926 = vpop.f32.mrf.mxu0
    %927 = vmatprep.mubr.f32.mxu0 0.0
    %928 = vmatmul.mubr.f32.gmra.mxu0 %v64
    %v929 = vpop.f32.mrf.mxu0
    %v930 = vadd.f32 0.0, %v929
    %v931 = vpop.f32.mrf.mxu0
    %932 = vmatprep.mubr.f32.mxu0 0.0
    %933 = vmatmul.mubr.f32.gmra.mxu0 %v65
    %v934 = vpop.f32.mrf.mxu0
    %v935 = vadd.f32 0.0, %v934
    %v936 = vpop.f32.mrf.mxu0
    %937 = vdwg.mxu0
    %v939 = vsel %vm261, %v860, 0
    %v942 = vsel %vm261, %v865, 0
    %v945 = vsel %vm261, %v870, 0
    %v948 = vsel %vm261, %v875, 0
    %v951 = vsel %vm261, %v880, 0
    %v954 = vsel %vm261, %v885, 0
    %v957 = vsel %vm261, %v890, 0
    %v960 = vsel %vm261, %v895, 0
    %v963 = vsel %vm261, %v900, 0
    %v966 = vsel %vm261, %v905, 0
    %v969 = vsel %vm261, %v910, 0
    %v972 = vsel %vm261, %v915, 0
    %v975 = vsel %vm261, %v920, 0
    %v978 = vsel %vm261, %v925, 0
    %v981 = vsel %vm261, %v930, 0
    %v984 = vsel %vm261, %v935, 0
    %986 = vmatprep.subr.mxu0 0.0
    %987 = vmatpush1.msra.mxu0 0.0
    %988 = vmatprep.subr.mxu0 0.0
    %989 = vmatpush1.msra.mxu0 0.0
    %990 = vmatprep.subr.mxu0 0.0
    %991 = vmatpush1.msra.mxu0 0.0
    %992 = vmatprep.subr.mxu0 0.0
    %993 = vmatpush1.msra.mxu0 0.0
    %994 = vmatprep.subr.mxu0 0.0
    %995 = vmatpush1.msra.mxu0 0.0
    %996 = vmatprep.subr.mxu0 0.0
    %997 = vmatpush1.msra.mxu0 0.0
    %998 = vmatprep.subr.mxu0 0.0
    %999 = vmatpush1.msra.mxu0 0.0
    %1000 = vmatprep.subr.mxu0 0.0
    %1001 = vmatpush1.msra.mxu0 0.0
    %1002 = vmatprep.subr.mxu0 0.0
    %1003 = vmatpush1.msra.mxu0 0.0
    %1004 = vmatprep.subr.mxu0 0.0
    %1005 = vmatpush1.msra.mxu0 0.0
    %1006 = vmatprep.subr.mxu0 0.0
    %1007 = vmatpush1.msra.mxu0 0.0
    %1008 = vmatprep.subr.mxu0 0.0
    %1009 = vmatpush1.msra.mxu0 0.0
    %1010 = vmatprep.subr.mxu0 0.0
    %1011 = vmatpush1.msra.mxu0 0.0
    %1012 = vmatprep.subr.mxu0 0.0
    %1013 = vmatpush1.msra.mxu0 0.0
    %1014 = vmatprep.subr.mxu0 0.0
    %1015 = vmatpush1.msra.mxu0 %v67
    %1016 = vmatprep.subr.mxu0 0.0
    %1017 = vmatpush1.msra.mxu0 %v66
    %1018 = vmatprep.subr.mxu0 0.0
    %1019 = vmatpush2.msra.mxu0 0.0
    %1020 = vmatprep.subr.mxu0 0.0
    %1021 = vmatpush2.msra.mxu0 0.0
    %1022 = vmatprep.subr.mxu0 0.0
    %1023 = vmatpush2.msra.mxu0 0.0
    %1024 = vmatprep.subr.mxu0 0.0
    %1025 = vmatpush2.msra.mxu0 0.0
    %1026 = vmatprep.subr.mxu0 0.0
    %1027 = vmatpush2.msra.mxu0 0.0
    %1028 = vmatprep.subr.mxu0 0.0
    %1029 = vmatpush2.msra.mxu0 0.0
    %1030 = vmatprep.subr.mxu0 0.0
    %1031 = vmatpush2.msra.mxu0 0.0
    %1032 = vmatprep.subr.mxu0 0.0
    %1033 = vmatpush2.msra.mxu0 0.0
    %1034 = vmatprep.subr.mxu0 0.0
    %1035 = vmatpush2.msra.mxu0 0.0
    %1036 = vmatprep.subr.mxu0 0.0
    %1037 = vmatpush2.msra.mxu0 0.0
    %1038 = vmatprep.subr.mxu0 0.0
    %1039 = vmatpush2.msra.mxu0 0.0
    %1040 = vmatprep.subr.mxu0 0.0
    %1041 = vmatpush2.msra.mxu0 0.0
    %1042 = vmatprep.subr.mxu0 0.0
    %1043 = vmatpush2.msra.mxu0 0.0
    %1044 = vmatprep.subr.mxu0 0.0
    %1045 = vmatpush2.msra.mxu0 0.0
    %1046 = vmatprep.subr.mxu0 0.0
    %1047 = vmatpush2.msra.mxu0 0.0
    %1048 = vmatprep.subr.mxu0 0.0
    %1049 = vmatpush2.msra.mxu0 0.0
    %1050 = vmatprep.mubr.f32.mxu0 0.0
    %1051 = vmatmul.mubr.f32.gmra.mxu0 %v939
    %v1052 = vpop.f32.mrf.mxu0
    %v1053 = vadd.f32 0.0, %v1052
    %v1054 = vpop.f32.mrf.mxu0
    %1055 = vmatprep.mubr.f32.mxu0 0.0
    %1056 = vmatmul.mubr.f32.gmra.mxu0 %v942
    %v1057 = vpop.f32.mrf.mxu0
    %v1058 = vadd.f32 0.0, %v1057
    %v1059 = vpop.f32.mrf.mxu0
    %1060 = vmatprep.mubr.f32.mxu0 0.0
    %1061 = vmatmul.mubr.f32.gmra.mxu0 %v945
    %v1062 = vpop.f32.mrf.mxu0
    %v1063 = vadd.f32 0.0, %v1062
    %v1064 = vpop.f32.mrf.mxu0
    %1065 = vmatprep.mubr.f32.mxu0 0.0
    %1066 = vmatmul.mubr.f32.gmra.mxu0 %v948
    %v1067 = vpop.f32.mrf.mxu0
    %v1068 = vadd.f32 0.0, %v1067
    %v1069 = vpop.f32.mrf.mxu0
    %1070 = vmatprep.mubr.f32.mxu0 0.0
    %1071 = vmatmul.mubr.f32.gmra.mxu0 %v951
    %v1072 = vpop.f32.mrf.mxu0
    %v1073 = vadd.f32 0.0, %v1072
    %v1074 = vpop.f32.mrf.mxu0
    %1075 = vmatprep.mubr.f32.mxu0 0.0
    %1076 = vmatmul.mubr.f32.gmra.mxu0 %v954
    %v1077 = vpop.f32.mrf.mxu0
    %v1078 = vadd.f32 0.0, %v1077
    %v1079 = vpop.f32.mrf.mxu0
    %1080 = vmatprep.mubr.f32.mxu0 0.0
    %1081 = vmatmul.mubr.f32.gmra.mxu0 %v957
    %v1082 = vpop.f32.mrf.mxu0
    %v1083 = vadd.f32 0.0, %v1082
    %v1084 = vpop.f32.mrf.mxu0
    %1085 = vmatprep.mubr.f32.mxu0 0.0
    %1086 = vmatmul.mubr.f32.gmra.mxu0 %v960
    %v1087 = vpop.f32.mrf.mxu0
    %v1088 = vadd.f32 0.0, %v1087
    %v1089 = vpop.f32.mrf.mxu0
    %1090 = vmatprep.mubr.f32.mxu0 0.0
    %1091 = vmatmul.mubr.f32.gmra.mxu0 %v963
    %v1092 = vpop.f32.mrf.mxu0
    %v1093 = vadd.f32 0.0, %v1092
    %v1094 = vpop.f32.mrf.mxu0
    %1095 = vmatprep.mubr.f32.mxu0 0.0
    %1096 = vmatmul.mubr.f32.gmra.mxu0 %v966
    %v1097 = vpop.f32.mrf.mxu0
    %v1098 = vadd.f32 0.0, %v1097
    %v1099 = vpop.f32.mrf.mxu0
    %1100 = vmatprep.mubr.f32.mxu0 0.0
    %1101 = vmatmul.mubr.f32.gmra.mxu0 %v969
    %v1102 = vpop.f32.mrf.mxu0
    %v1103 = vadd.f32 0.0, %v1102
    %v1104 = vpop.f32.mrf.mxu0
    %1105 = vmatprep.mubr.f32.mxu0 0.0
    %1106 = vmatmul.mubr.f32.gmra.mxu0 %v972
    %v1107 = vpop.f32.mrf.mxu0
    %v1108 = vadd.f32 0.0, %v1107
    %v1109 = vpop.f32.mrf.mxu0
    %1110 = vmatprep.mubr.f32.mxu0 0.0
    %1111 = vmatmul.mubr.f32.gmra.mxu0 %v975
    %v1112 = vpop.f32.mrf.mxu0
    %v1113 = vadd.f32 0.0, %v1112
    %v1114 = vpop.f32.mrf.mxu0
    %1115 = vmatprep.mubr.f32.mxu0 0.0
    %1116 = vmatmul.mubr.f32.gmra.mxu0 %v978
    %v1117 = vpop.f32.mrf.mxu0
    %v1118 = vadd.f32 0.0, %v1117
    %v1119 = vpop.f32.mrf.mxu0
    %1120 = vmatprep.mubr.f32.mxu0 0.0
    %1121 = vmatmul.mubr.f32.gmra.mxu0 %v981
    %v1122 = vpop.f32.mrf.mxu0
    %v1123 = vadd.f32 0.0, %v1122
    %v1124 = vpop.f32.mrf.mxu0
    %1125 = vmatprep.mubr.f32.mxu0 0.0
    %1126 = vmatmul.mubr.f32.gmra.mxu0 %v984
    %v1127 = vpop.f32.mrf.mxu0
    %v1128 = vadd.f32 0.0, %v1127
    %v1129 = vpop.f32.mrf.mxu0
    %1130 = vdwg.mxu0
    %1131 = vmatprep.subr.mxu0 0.0
    %1132 = vmatpush1.msra.mxu0 %v99
    %1133 = vmatprep.subr.mxu0 0.0
    %1134 = vmatpush1.msra.mxu0 %v98
    %1135 = vmatprep.subr.mxu0 0.0
    %1136 = vmatpush1.msra.mxu0 %v97
    %1137 = vmatprep.subr.mxu0 0.0
    %1138 = vmatpush1.msra.mxu0 %v96
    %1139 = vmatprep.subr.mxu0 0.0
    %1140 = vmatpush1.msra.mxu0 %v95
    %1141 = vmatprep.subr.mxu0 0.0
    %1142 = vmatpush1.msra.mxu0 %v94
    %1143 = vmatprep.subr.mxu0 0.0
    %1144 = vmatpush1.msra.mxu0 %v93
    %1145 = vmatprep.subr.mxu0 0.0
    %1146 = vmatpush1.msra.mxu0 %v92
    %1147 = vmatprep.subr.mxu0 0.0
    %1148 = vmatpush1.msra.mxu0 %v91
    %1149 = vmatprep.subr.mxu0 0.0
    %1150 = vmatpush1.msra.mxu0 %v90
    %1151 = vmatprep.subr.mxu0 0.0
    %1152 = vmatpush1.msra.mxu0 %v89
    %1153 = vmatprep.subr.mxu0 0.0
    %1154 = vmatpush1.msra.mxu0 %v88
    %1155 = vmatprep.subr.mxu0 0.0
    %1156 = vmatpush1.msra.mxu0 %v87
    %1157 = vmatprep.subr.mxu0 0.0
    %1158 = vmatpush1.msra.mxu0 %v86
    %1159 = vmatprep.subr.mxu0 0.0
    %1160 = vmatpush1.msra.mxu0 %v85
    %1161 = vmatprep.subr.mxu0 0.0
    %1162 = vmatpush1.msra.mxu0 %v84
    %1163 = vmatprep.subr.mxu0 0.0
    %1164 = vmatpush2.msra.mxu0 0.0
    %1165 = vmatprep.subr.mxu0 0.0
    %1166 = vmatpush2.msra.mxu0 0.0
    %1167 = vmatprep.subr.mxu0 0.0
    %1168 = vmatpush2.msra.mxu0 0.0
    %1169 = vmatprep.subr.mxu0 0.0
    %1170 = vmatpush2.msra.mxu0 0.0
    %1171 = vmatprep.subr.mxu0 0.0
    %1172 = vmatpush2.msra.mxu0 0.0
    %1173 = vmatprep.subr.mxu0 0.0
    %1174 = vmatpush2.msra.mxu0 0.0
    %1175 = vmatprep.subr.mxu0 0.0
    %1176 = vmatpush2.msra.mxu0 0.0
    %1177 = vmatprep.subr.mxu0 0.0
    %1178 = vmatpush2.msra.mxu0 0.0
    %1179 = vmatprep.subr.mxu0 0.0
    %1180 = vmatpush2.msra.mxu0 0.0
    %1181 = vmatprep.subr.mxu0 0.0
    %1182 = vmatpush2.msra.mxu0 0.0
    %1183 = vmatprep.subr.mxu0 0.0
    %1184 = vmatpush2.msra.mxu0 0.0
    %1185 = vmatprep.subr.mxu0 0.0
    %1186 = vmatpush2.msra.mxu0 0.0
    %1187 = vmatprep.subr.mxu0 0.0
    %1188 = vmatpush2.msra.mxu0 0.0
    %1189 = vmatprep.subr.mxu0 0.0
    %1190 = vmatpush2.msra.mxu0 0.0
    %1191 = vmatprep.subr.mxu0 0.0
    %1192 = vmatpush2.msra.mxu0 0.0
    %1193 = vmatprep.subr.mxu0 0.0
    %1194 = vmatpush2.msra.mxu0 0.0
    %1195 = vmatprep.mubr.f32.mxu0 0.0
    %1196 = vmatmul.mubr.f32.gmra.mxu0 %v50
    %v1197 = vpop.f32.mrf.mxu0
    %v1198 = vadd.f32 0.0, %v1197
    %v1199 = vpop.f32.mrf.mxu0
    %1200 = vmatprep.mubr.f32.mxu0 0.0
    %1201 = vmatmul.mubr.f32.gmra.mxu0 %v51
    %v1202 = vpop.f32.mrf.mxu0
    %v1203 = vadd.f32 0.0, %v1202
    %v1204 = vpop.f32.mrf.mxu0
    %1205 = vmatprep.mubr.f32.mxu0 0.0
    %1206 = vmatmul.mubr.f32.gmra.mxu0 %v52
    %v1207 = vpop.f32.mrf.mxu0
    %v1208 = vadd.f32 0.0, %v1207
    %v1209 = vpop.f32.mrf.mxu0
    %1210 = vmatprep.mubr.f32.mxu0 0.0
    %1211 = vmatmul.mubr.f32.gmra.mxu0 %v53
    %v1212 = vpop.f32.mrf.mxu0
    %v1213 = vadd.f32 0.0, %v1212
    %v1214 = vpop.f32.mrf.mxu0
    %1215 = vmatprep.mubr.f32.mxu0 0.0
    %1216 = vmatmul.mubr.f32.gmra.mxu0 %v54
    %v1217 = vpop.f32.mrf.mxu0
    %v1218 = vadd.f32 0.0, %v1217
    %v1219 = vpop.f32.mrf.mxu0
    %1220 = vmatprep.mubr.f32.mxu0 0.0
    %1221 = vmatmul.mubr.f32.gmra.mxu0 %v55
    %v1222 = vpop.f32.mrf.mxu0
    %v1223 = vadd.f32 0.0, %v1222
    %v1224 = vpop.f32.mrf.mxu0
    %1225 = vmatprep.mubr.f32.mxu0 0.0
    %1226 = vmatmul.mubr.f32.gmra.mxu0 %v56
    %v1227 = vpop.f32.mrf.mxu0
    %v1228 = vadd.f32 0.0, %v1227
    %v1229 = vpop.f32.mrf.mxu0
    %1230 = vmatprep.mubr.f32.mxu0 0.0
    %1231 = vmatmul.mubr.f32.gmra.mxu0 %v57
    %v1232 = vpop.f32.mrf.mxu0
    %v1233 = vadd.f32 0.0, %v1232
    %v1234 = vpop.f32.mrf.mxu0
    %1235 = vmatprep.mubr.f32.mxu0 0.0
    %1236 = vmatmul.mubr.f32.gmra.mxu0 %v58
    %v1237 = vpop.f32.mrf.mxu0
    %v1238 = vadd.f32 0.0, %v1237
    %v1239 = vpop.f32.mrf.mxu0
    %1240 = vmatprep.mubr.f32.mxu0 0.0
    %1241 = vmatmul.mubr.f32.gmra.mxu0 %v59
    %v1242 = vpop.f32.mrf.mxu0
    %v1243 = vadd.f32 0.0, %v1242
    %v1244 = vpop.f32.mrf.mxu0
    %1245 = vmatprep.mubr.f32.mxu0 0.0
    %1246 = vmatmul.mubr.f32.gmra.mxu0 %v60
    %v1247 = vpop.f32.mrf.mxu0
    %v1248 = vadd.f32 0.0, %v1247
    %v1249 = vpop.f32.mrf.mxu0
    %1250 = vmatprep.mubr.f32.mxu0 0.0
    %1251 = vmatmul.mubr.f32.gmra.mxu0 %v61
    %v1252 = vpop.f32.mrf.mxu0
    %v1253 = vadd.f32 0.0, %v1252
    %v1254 = vpop.f32.mrf.mxu0
    %1255 = vmatprep.mubr.f32.mxu0 0.0
    %1256 = vmatmul.mubr.f32.gmra.mxu0 %v62
    %v1257 = vpop.f32.mrf.mxu0
    %v1258 = vadd.f32 0.0, %v1257
    %v1259 = vpop.f32.mrf.mxu0
    %1260 = vmatprep.mubr.f32.mxu0 0.0
    %1261 = vmatmul.mubr.f32.gmra.mxu0 %v63
    %v1262 = vpop.f32.mrf.mxu0
    %v1263 = vadd.f32 0.0, %v1262
    %v1264 = vpop.f32.mrf.mxu0
    %1265 = vmatprep.mubr.f32.mxu0 0.0
    %1266 = vmatmul.mubr.f32.gmra.mxu0 %v64
    %v1267 = vpop.f32.mrf.mxu0
    %v1268 = vadd.f32 0.0, %v1267
    %v1269 = vpop.f32.mrf.mxu0
    %1270 = vmatprep.mubr.f32.mxu0 0.0
    %1271 = vmatmul.mubr.f32.gmra.mxu0 %v65
    %v1272 = vpop.f32.mrf.mxu0
    %v1273 = vadd.f32 0.0, %v1272
    %v1274 = vpop.f32.mrf.mxu0
    %1275 = vdwg.mxu0
    %v1277 = vsel %vm261, %v1198, 0
    %v1280 = vsel %vm261, %v1203, 0
    %v1283 = vsel %vm261, %v1208, 0
    %v1286 = vsel %vm261, %v1213, 0
    %v1289 = vsel %vm261, %v1218, 0
    %v1292 = vsel %vm261, %v1223, 0
    %v1295 = vsel %vm261, %v1228, 0
    %v1298 = vsel %vm261, %v1233, 0
    %v1301 = vsel %vm261, %v1238, 0
    %v1304 = vsel %vm261, %v1243, 0
    %v1307 = vsel %vm261, %v1248, 0
    %v1310 = vsel %vm261, %v1253, 0
    %v1313 = vsel %vm261, %v1258, 0
    %v1316 = vsel %vm261, %v1263, 0
    %v1319 = vsel %vm261, %v1268, 0
    %v1322 = vsel %vm261, %v1273, 0
    %1324 = vmatprep.subr.mxu0 0.0
    %1325 = vmatpush1.msra.mxu0 0.0
    %1326 = vmatprep.subr.mxu0 0.0
    %1327 = vmatpush1.msra.mxu0 0.0
    %1328 = vmatprep.subr.mxu0 0.0
    %1329 = vmatpush1.msra.mxu0 0.0
    %1330 = vmatprep.subr.mxu0 0.0
    %1331 = vmatpush1.msra.mxu0 0.0
    %1332 = vmatprep.subr.mxu0 0.0
    %1333 = vmatpush1.msra.mxu0 0.0
    %1334 = vmatprep.subr.mxu0 0.0
    %1335 = vmatpush1.msra.mxu0 0.0
    %1336 = vmatprep.subr.mxu0 0.0
    %1337 = vmatpush1.msra.mxu0 0.0
    %1338 = vmatprep.subr.mxu0 0.0
    %1339 = vmatpush1.msra.mxu0 0.0
    %1340 = vmatprep.subr.mxu0 0.0
    %1341 = vmatpush1.msra.mxu0 0.0
    %1342 = vmatprep.subr.mxu0 0.0
    %1343 = vmatpush1.msra.mxu0 0.0
    %1344 = vmatprep.subr.mxu0 0.0
    %1345 = vmatpush1.msra.mxu0 0.0
    %1346 = vmatprep.subr.mxu0 0.0
    %1347 = vmatpush1.msra.mxu0 0.0
    %1348 = vmatprep.subr.mxu0 0.0
    %1349 = vmatpush1.msra.mxu0 0.0
    %1350 = vmatprep.subr.mxu0 0.0
    %1351 = vmatpush1.msra.mxu0 0.0
    %1352 = vmatprep.subr.mxu0 0.0
    %1353 = vmatpush1.msra.mxu0 %v67
    %1354 = vmatprep.subr.mxu0 0.0
    %1355 = vmatpush1.msra.mxu0 %v66
    %1356 = vmatprep.subr.mxu0 0.0
    %1357 = vmatpush2.msra.mxu0 0.0
    %1358 = vmatprep.subr.mxu0 0.0
    %1359 = vmatpush2.msra.mxu0 0.0
    %1360 = vmatprep.subr.mxu0 0.0
    %1361 = vmatpush2.msra.mxu0 0.0
    %1362 = vmatprep.subr.mxu0 0.0
    %1363 = vmatpush2.msra.mxu0 0.0
    %1364 = vmatprep.subr.mxu0 0.0
    %1365 = vmatpush2.msra.mxu0 0.0
    %1366 = vmatprep.subr.mxu0 0.0
    %1367 = vmatpush2.msra.mxu0 0.0
    %1368 = vmatprep.subr.mxu0 0.0
    %1369 = vmatpush2.msra.mxu0 0.0
    %1370 = vmatprep.subr.mxu0 0.0
    %1371 = vmatpush2.msra.mxu0 0.0
    %1372 = vmatprep.subr.mxu0 0.0
    %1373 = vmatpush2.msra.mxu0 0.0
    %1374 = vmatprep.subr.mxu0 0.0
    %1375 = vmatpush2.msra.mxu0 0.0
    %1376 = vmatprep.subr.mxu0 0.0
    %1377 = vmatpush2.msra.mxu0 0.0
    %1378 = vmatprep.subr.mxu0 0.0
    %1379 = vmatpush2.msra.mxu0 0.0
    %1380 = vmatprep.subr.mxu0 0.0
    %1381 = vmatpush2.msra.mxu0 0.0
    %1382 = vmatprep.subr.mxu0 0.0
    %1383 = vmatpush2.msra.mxu0 0.0
    %1384 = vmatprep.subr.mxu0 0.0
    %1385 = vmatpush2.msra.mxu0 0.0
    %1386 = vmatprep.subr.mxu0 0.0
    %1387 = vmatpush2.msra.mxu0 0.0
    %1388 = vmatprep.mubr.f32.mxu0 0.0
    %1389 = vmatmul.mubr.f32.gmra.mxu0 %v1277
    %v1390 = vpop.f32.mrf.mxu0
    %v1391 = vadd.f32 0.0, %v1390
    %v1392 = vpop.f32.mrf.mxu0
    %1393 = vmatprep.mubr.f32.mxu0 0.0
    %1394 = vmatmul.mubr.f32.gmra.mxu0 %v1280
    %v1395 = vpop.f32.mrf.mxu0
    %v1396 = vadd.f32 0.0, %v1395
    %v1397 = vpop.f32.mrf.mxu0
    %1398 = vmatprep.mubr.f32.mxu0 0.0
    %1399 = vmatmul.mubr.f32.gmra.mxu0 %v1283
    %v1400 = vpop.f32.mrf.mxu0
    %v1401 = vadd.f32 0.0, %v1400
    %v1402 = vpop.f32.mrf.mxu0
    %1403 = vmatprep.mubr.f32.mxu0 0.0
    %1404 = vmatmul.mubr.f32.gmra.mxu0 %v1286
    %v1405 = vpop.f32.mrf.mxu0
    %v1406 = vadd.f32 0.0, %v1405
    %v1407 = vpop.f32.mrf.mxu0
    %1408 = vmatprep.mubr.f32.mxu0 0.0
    %1409 = vmatmul.mubr.f32.gmra.mxu0 %v1289
    %v1410 = vpop.f32.mrf.mxu0
    %v1411 = vadd.f32 0.0, %v1410
    %v1412 = vpop.f32.mrf.mxu0
    %1413 = vmatprep.mubr.f32.mxu0 0.0
    %1414 = vmatmul.mubr.f32.gmra.mxu0 %v1292
    %v1415 = vpop.f32.mrf.mxu0
    %v1416 = vadd.f32 0.0, %v1415
    %v1417 = vpop.f32.mrf.mxu0
    %1418 = vmatprep.mubr.f32.mxu0 0.0
    %1419 = vmatmul.mubr.f32.gmra.mxu0 %v1295
    %v1420 = vpop.f32.mrf.mxu0
    %v1421 = vadd.f32 0.0, %v1420
    %v1422 = vpop.f32.mrf.mxu0
    %1423 = vmatprep.mubr.f32.mxu0 0.0
    %1424 = vmatmul.mubr.f32.gmra.mxu0 %v1298
    %v1425 = vpop.f32.mrf.mxu0
    %v1426 = vadd.f32 0.0, %v1425
    %v1427 = vpop.f32.mrf.mxu0
    %1428 = vmatprep.mubr.f32.mxu0 0.0
    %1429 = vmatmul.mubr.f32.gmra.mxu0 %v1301
    %v1430 = vpop.f32.mrf.mxu0
    %v1431 = vadd.f32 0.0, %v1430
    %v1432 = vpop.f32.mrf.mxu0
    %1433 = vmatprep.mubr.f32.mxu0 0.0
    %1434 = vmatmul.mubr.f32.gmra.mxu0 %v1304
    %v1435 = vpop.f32.mrf.mxu0
    %v1436 = vadd.f32 0.0, %v1435
    %v1437 = vpop.f32.mrf.mxu0
    %1438 = vmatprep.mubr.f32.mxu0 0.0
    %1439 = vmatmul.mubr.f32.gmra.mxu0 %v1307
    %v1440 = vpop.f32.mrf.mxu0
    %v1441 = vadd.f32 0.0, %v1440
    %v1442 = vpop.f32.mrf.mxu0
    %1443 = vmatprep.mubr.f32.mxu0 0.0
    %1444 = vmatmul.mubr.f32.gmra.mxu0 %v1310
    %v1445 = vpop.f32.mrf.mxu0
    %v1446 = vadd.f32 0.0, %v1445
    %v1447 = vpop.f32.mrf.mxu0
    %1448 = vmatprep.mubr.f32.mxu0 0.0
    %1449 = vmatmul.mubr.f32.gmra.mxu0 %v1313
    %v1450 = vpop.f32.mrf.mxu0
    %v1451 = vadd.f32 0.0, %v1450
    %v1452 = vpop.f32.mrf.mxu0
    %1453 = vmatprep.mubr.f32.mxu0 0.0
    %1454 = vmatmul.mubr.f32.gmra.mxu0 %v1316
    %v1455 = vpop.f32.mrf.mxu0
    %v1456 = vadd.f32 0.0, %v1455
    %v1457 = vpop.f32.mrf.mxu0
    %1458 = vmatprep.mubr.f32.mxu0 0.0
    %1459 = vmatmul.mubr.f32.gmra.mxu0 %v1319
    %v1460 = vpop.f32.mrf.mxu0
    %v1461 = vadd.f32 0.0, %v1460
    %v1462 = vpop.f32.mrf.mxu0
    %1463 = vmatprep.mubr.f32.mxu0 0.0
    %1464 = vmatmul.mubr.f32.gmra.mxu0 %v1322
    %v1465 = vpop.f32.mrf.mxu0
    %v1466 = vadd.f32 0.0, %v1465
    %v1467 = vpop.f32.mrf.mxu0
    %1468 = vdwg.mxu0
    %1469 = vmatprep.subr.mxu0 0.0
    %1470 = vmatpush1.msra.mxu0 %v115
    %1471 = vmatprep.subr.mxu0 0.0
    %1472 = vmatpush1.msra.mxu0 %v114
    %1473 = vmatprep.subr.mxu0 0.0
    %1474 = vmatpush1.msra.mxu0 %v113
    %1475 = vmatprep.subr.mxu0 0.0
    %1476 = vmatpush1.msra.mxu0 %v112
    %1477 = vmatprep.subr.mxu0 0.0
    %1478 = vmatpush1.msra.mxu0 %v111
    %1479 = vmatprep.subr.mxu0 0.0
    %1480 = vmatpush1.msra.mxu0 %v110
    %1481 = vmatprep.subr.mxu0 0.0
    %1482 = vmatpush1.msra.mxu0 %v109
    %1483 = vmatprep.subr.mxu0 0.0
    %1484 = vmatpush1.msra.mxu0 %v108
    %1485 = vmatprep.subr.mxu0 0.0
    %1486 = vmatpush1.msra.mxu0 %v107
    %1487 = vmatprep.subr.mxu0 0.0
    %1488 = vmatpush1.msra.mxu0 %v106
    %1489 = vmatprep.subr.mxu0 0.0
    %1490 = vmatpush1.msra.mxu0 %v105
    %1491 = vmatprep.subr.mxu0 0.0
    %1492 = vmatpush1.msra.mxu0 %v104
    %1493 = vmatprep.subr.mxu0 0.0
    %1494 = vmatpush1.msra.mxu0 %v103
    %1495 = vmatprep.subr.mxu0 0.0
    %1496 = vmatpush1.msra.mxu0 %v102
    %1497 = vmatprep.subr.mxu0 0.0
    %1498 = vmatpush1.msra.mxu0 %v101
    %1499 = vmatprep.subr.mxu0 0.0
    %1500 = vmatpush1.msra.mxu0 %v100
    %1501 = vmatprep.subr.mxu0 0.0
    %1502 = vmatpush2.msra.mxu0 0.0
    %1503 = vmatprep.subr.mxu0 0.0
    %1504 = vmatpush2.msra.mxu0 0.0
    %1505 = vmatprep.subr.mxu0 0.0
    %1506 = vmatpush2.msra.mxu0 0.0
    %1507 = vmatprep.subr.mxu0 0.0
    %1508 = vmatpush2.msra.mxu0 0.0
    %1509 = vmatprep.subr.mxu0 0.0
    %1510 = vmatpush2.msra.mxu0 0.0
    %1511 = vmatprep.subr.mxu0 0.0
    %1512 = vmatpush2.msra.mxu0 0.0
    %1513 = vmatprep.subr.mxu0 0.0
    %1514 = vmatpush2.msra.mxu0 0.0
    %1515 = vmatprep.subr.mxu0 0.0
    %1516 = vmatpush2.msra.mxu0 0.0
    %1517 = vmatprep.subr.mxu0 0.0
    %1518 = vmatpush2.msra.mxu0 0.0
    %1519 = vmatprep.subr.mxu0 0.0
    %1520 = vmatpush2.msra.mxu0 0.0
    %1521 = vmatprep.subr.mxu0 0.0
    %1522 = vmatpush2.msra.mxu0 0.0
    %1523 = vmatprep.subr.mxu0 0.0
    %1524 = vmatpush2.msra.mxu0 0.0
    %1525 = vmatprep.subr.mxu0 0.0
    %1526 = vmatpush2.msra.mxu0 0.0
    %1527 = vmatprep.subr.mxu0 0.0
    %1528 = vmatpush2.msra.mxu0 0.0
    %1529 = vmatprep.subr.mxu0 0.0
    %1530 = vmatpush2.msra.mxu0 0.0
    %1531 = vmatprep.subr.mxu0 0.0
    %1532 = vmatpush2.msra.mxu0 0.0
    %1533 = vmatprep.mubr.f32.mxu0 0.0
    %1534 = vmatmul.mubr.f32.gmra.mxu0 %v50
    %v1535 = vpop.f32.mrf.mxu0
    %v1536 = vadd.f32 0.0, %v1535
    %v1537 = vpop.f32.mrf.mxu0
    %1538 = vmatprep.mubr.f32.mxu0 0.0
    %1539 = vmatmul.mubr.f32.gmra.mxu0 %v51
    %v1540 = vpop.f32.mrf.mxu0
    %v1541 = vadd.f32 0.0, %v1540
    %v1542 = vpop.f32.mrf.mxu0
    %1543 = vmatprep.mubr.f32.mxu0 0.0
    %1544 = vmatmul.mubr.f32.gmra.mxu0 %v52
    %v1545 = vpop.f32.mrf.mxu0
    %v1546 = vadd.f32 0.0, %v1545
    %v1547 = vpop.f32.mrf.mxu0
    %1548 = vmatprep.mubr.f32.mxu0 0.0
    %1549 = vmatmul.mubr.f32.gmra.mxu0 %v53
    %v1550 = vpop.f32.mrf.mxu0
    %v1551 = vadd.f32 0.0, %v1550
    %v1552 = vpop.f32.mrf.mxu0
    %1553 = vmatprep.mubr.f32.mxu0 0.0
    %1554 = vmatmul.mubr.f32.gmra.mxu0 %v54
    %v1555 = vpop.f32.mrf.mxu0
    %v1556 = vadd.f32 0.0, %v1555
    %v1557 = vpop.f32.mrf.mxu0
    %1558 = vmatprep.mubr.f32.mxu0 0.0
    %1559 = vmatmul.mubr.f32.gmra.mxu0 %v55
    %v1560 = vpop.f32.mrf.mxu0
    %v1561 = vadd.f32 0.0, %v1560
    %v1562 = vpop.f32.mrf.mxu0
    %1563 = vmatprep.mubr.f32.mxu0 0.0
    %1564 = vmatmul.mubr.f32.gmra.mxu0 %v56
    %v1565 = vpop.f32.mrf.mxu0
    %v1566 = vadd.f32 0.0, %v1565
    %v1567 = vpop.f32.mrf.mxu0
    %1568 = vmatprep.mubr.f32.mxu0 0.0
    %1569 = vmatmul.mubr.f32.gmra.mxu0 %v57
    %v1570 = vpop.f32.mrf.mxu0
    %v1571 = vadd.f32 0.0, %v1570
    %v1572 = vpop.f32.mrf.mxu0
    %1573 = vmatprep.mubr.f32.mxu0 0.0
    %1574 = vmatmul.mubr.f32.gmra.mxu0 %v58
    %v1575 = vpop.f32.mrf.mxu0
    %v1576 = vadd.f32 0.0, %v1575
    %v1577 = vpop.f32.mrf.mxu0
    %1578 = vmatprep.mubr.f32.mxu0 0.0
    %1579 = vmatmul.mubr.f32.gmra.mxu0 %v59
    %v1580 = vpop.f32.mrf.mxu0
    %v1581 = vadd.f32 0.0, %v1580
    %v1582 = vpop.f32.mrf.mxu0
    %1583 = vmatprep.mubr.f32.mxu0 0.0
    %1584 = vmatmul.mubr.f32.gmra.mxu0 %v60
    %v1585 = vpop.f32.mrf.mxu0
    %v1586 = vadd.f32 0.0, %v1585
    %v1587 = vpop.f32.mrf.mxu0
    %1588 = vmatprep.mubr.f32.mxu0 0.0
    %1589 = vmatmul.mubr.f32.gmra.mxu0 %v61
    %v1590 = vpop.f32.mrf.mxu0
    %v1591 = vadd.f32 0.0, %v1590
    %v1592 = vpop.f32.mrf.mxu0
    %1593 = vmatprep.mubr.f32.mxu0 0.0
    %1594 = vmatmul.mubr.f32.gmra.mxu0 %v62
    %v1595 = vpop.f32.mrf.mxu0
    %v1596 = vadd.f32 0.0, %v1595
    %v1597 = vpop.f32.mrf.mxu0
    %1598 = vmatprep.mubr.f32.mxu0 0.0
    %1599 = vmatmul.mubr.f32.gmra.mxu0 %v63
    %v1600 = vpop.f32.mrf.mxu0
    %v1601 = vadd.f32 0.0, %v1600
    %v1602 = vpop.f32.mrf.mxu0
    %1603 = vmatprep.mubr.f32.mxu0 0.0
    %1604 = vmatmul.mubr.f32.gmra.mxu0 %v64
    %v1605 = vpop.f32.mrf.mxu0
    %v1606 = vadd.f32 0.0, %v1605
    %v1607 = vpop.f32.mrf.mxu0
    %1608 = vmatprep.mubr.f32.mxu0 0.0
    %1609 = vmatmul.mubr.f32.gmra.mxu0 %v65
    %v1610 = vpop.f32.mrf.mxu0
    %v1611 = vadd.f32 0.0, %v1610
    %v1612 = vpop.f32.mrf.mxu0
    %1613 = vdwg.mxu0
    %v1615 = vsel %vm261, %v1536, 0
    %v1618 = vsel %vm261, %v1541, 0
    %v1621 = vsel %vm261, %v1546, 0
    %v1624 = vsel %vm261, %v1551, 0
    %v1627 = vsel %vm261, %v1556, 0
    %v1630 = vsel %vm261, %v1561, 0
    %v1633 = vsel %vm261, %v1566, 0
    %v1636 = vsel %vm261, %v1571, 0
    %v1639 = vsel %vm261, %v1576, 0
    %v1642 = vsel %vm261, %v1581, 0
    %v1645 = vsel %vm261, %v1586, 0
    %v1648 = vsel %vm261, %v1591, 0
    %v1651 = vsel %vm261, %v1596, 0
    %v1654 = vsel %vm261, %v1601, 0
    %v1657 = vsel %vm261, %v1606, 0
    %v1660 = vsel %vm261, %v1611, 0
    %1662 = vmatprep.subr.mxu0 0.0
    %1663 = vmatpush1.msra.mxu0 0.0
    %1664 = vmatprep.subr.mxu0 0.0
    %1665 = vmatpush1.msra.mxu0 0.0
    %1666 = vmatprep.subr.mxu0 0.0
    %1667 = vmatpush1.msra.mxu0 0.0
    %1668 = vmatprep.subr.mxu0 0.0
    %1669 = vmatpush1.msra.mxu0 0.0
    %1670 = vmatprep.subr.mxu0 0.0
    %1671 = vmatpush1.msra.mxu0 0.0
    %1672 = vmatprep.subr.mxu0 0.0
    %1673 = vmatpush1.msra.mxu0 0.0
    %1674 = vmatprep.subr.mxu0 0.0
    %1675 = vmatpush1.msra.mxu0 0.0
    %1676 = vmatprep.subr.mxu0 0.0
    %1677 = vmatpush1.msra.mxu0 0.0
    %1678 = vmatprep.subr.mxu0 0.0
    %1679 = vmatpush1.msra.mxu0 0.0
    %1680 = vmatprep.subr.mxu0 0.0
    %1681 = vmatpush1.msra.mxu0 0.0
    %1682 = vmatprep.subr.mxu0 0.0
    %1683 = vmatpush1.msra.mxu0 0.0
    %1684 = vmatprep.subr.mxu0 0.0
    %1685 = vmatpush1.msra.mxu0 0.0
    %1686 = vmatprep.subr.mxu0 0.0
    %1687 = vmatpush1.msra.mxu0 0.0
    %1688 = vmatprep.subr.mxu0 0.0
    %1689 = vmatpush1.msra.mxu0 0.0
    %1690 = vmatprep.subr.mxu0 0.0
    %1691 = vmatpush1.msra.mxu0 %v67
    %1692 = vmatprep.subr.mxu0 0.0
    %1693 = vmatpush1.msra.mxu0 %v66
    %1694 = vmatprep.subr.mxu0 0.0
    %1695 = vmatpush2.msra.mxu0 0.0
    %1696 = vmatprep.subr.mxu0 0.0
    %1697 = vmatpush2.msra.mxu0 0.0
    %1698 = vmatprep.subr.mxu0 0.0
    %1699 = vmatpush2.msra.mxu0 0.0
    %1700 = vmatprep.subr.mxu0 0.0
    %1701 = vmatpush2.msra.mxu0 0.0
    %1702 = vmatprep.subr.mxu0 0.0
    %1703 = vmatpush2.msra.mxu0 0.0
    %1704 = vmatprep.subr.mxu0 0.0
    %1705 = vmatpush2.msra.mxu0 0.0
    %1706 = vmatprep.subr.mxu0 0.0
    %1707 = vmatpush2.msra.mxu0 0.0
    %1708 = vmatprep.subr.mxu0 0.0
    %1709 = vmatpush2.msra.mxu0 0.0
    %1710 = vmatprep.subr.mxu0 0.0
    %1711 = vmatpush2.msra.mxu0 0.0
    %1712 = vmatprep.subr.mxu0 0.0
    %1713 = vmatpush2.msra.mxu0 0.0
    %1714 = vmatprep.subr.mxu0 0.0
    %1715 = vmatpush2.msra.mxu0 0.0
    %1716 = vmatprep.subr.mxu0 0.0
    %1717 = vmatpush2.msra.mxu0 0.0
    %1718 = vmatprep.subr.mxu0 0.0
    %1719 = vmatpush2.msra.mxu0 0.0
    %1720 = vmatprep.subr.mxu0 0.0
    %1721 = vmatpush2.msra.mxu0 0.0
    %1722 = vmatprep.subr.mxu0 0.0
    %1723 = vmatpush2.msra.mxu0 0.0
    %1724 = vmatprep.subr.mxu0 0.0
    %1725 = vmatpush2.msra.mxu0 0.0
    %1726 = vmatprep.mubr.f32.mxu0 0.0
    %1727 = vmatmul.mubr.f32.gmra.mxu0 %v1615
    %v1728 = vpop.f32.mrf.mxu0
    %v1729 = vadd.f32 0.0, %v1728
    %v1730 = vpop.f32.mrf.mxu0
    %1731 = vmatprep.mubr.f32.mxu0 0.0
    %1732 = vmatmul.mubr.f32.gmra.mxu0 %v1618
    %v1733 = vpop.f32.mrf.mxu0
    %v1734 = vadd.f32 0.0, %v1733
    %v1735 = vpop.f32.mrf.mxu0
    %1736 = vmatprep.mubr.f32.mxu0 0.0
    %1737 = vmatmul.mubr.f32.gmra.mxu0 %v1621
    %v1738 = vpop.f32.mrf.mxu0
    %v1739 = vadd.f32 0.0, %v1738
    %v1740 = vpop.f32.mrf.mxu0
    %1741 = vmatprep.mubr.f32.mxu0 0.0
    %1742 = vmatmul.mubr.f32.gmra.mxu0 %v1624
    %v1743 = vpop.f32.mrf.mxu0
    %v1744 = vadd.f32 0.0, %v1743
    %v1745 = vpop.f32.mrf.mxu0
    %1746 = vmatprep.mubr.f32.mxu0 0.0
    %1747 = vmatmul.mubr.f32.gmra.mxu0 %v1627
    %v1748 = vpop.f32.mrf.mxu0
    %v1749 = vadd.f32 0.0, %v1748
    %v1750 = vpop.f32.mrf.mxu0
    %1751 = vmatprep.mubr.f32.mxu0 0.0
    %1752 = vmatmul.mubr.f32.gmra.mxu0 %v1630
    %v1753 = vpop.f32.mrf.mxu0
    %v1754 = vadd.f32 0.0, %v1753
    %v1755 = vpop.f32.mrf.mxu0
    %1756 = vmatprep.mubr.f32.mxu0 0.0
    %1757 = vmatmul.mubr.f32.gmra.mxu0 %v1633
    %v1758 = vpop.f32.mrf.mxu0
    %v1759 = vadd.f32 0.0, %v1758
    %v1760 = vpop.f32.mrf.mxu0
    %1761 = vmatprep.mubr.f32.mxu0 0.0
    %1762 = vmatmul.mubr.f32.gmra.mxu0 %v1636
    %v1763 = vpop.f32.mrf.mxu0
    %v1764 = vadd.f32 0.0, %v1763
    %v1765 = vpop.f32.mrf.mxu0
    %1766 = vmatprep.mubr.f32.mxu0 0.0
    %1767 = vmatmul.mubr.f32.gmra.mxu0 %v1639
    %v1768 = vpop.f32.mrf.mxu0
    %v1769 = vadd.f32 0.0, %v1768
    %v1770 = vpop.f32.mrf.mxu0
    %1771 = vmatprep.mubr.f32.mxu0 0.0
    %1772 = vmatmul.mubr.f32.gmra.mxu0 %v1642
    %v1773 = vpop.f32.mrf.mxu0
    %v1774 = vadd.f32 0.0, %v1773
    %v1775 = vpop.f32.mrf.mxu0
    %1776 = vmatprep.mubr.f32.mxu0 0.0
    %1777 = vmatmul.mubr.f32.gmra.mxu0 %v1645
    %v1778 = vpop.f32.mrf.mxu0
    %v1779 = vadd.f32 0.0, %v1778
    %v1780 = vpop.f32.mrf.mxu0
    %1781 = vmatprep.mubr.f32.mxu0 0.0
    %1782 = vmatmul.mubr.f32.gmra.mxu0 %v1648
    %v1783 = vpop.f32.mrf.mxu0
    %v1784 = vadd.f32 0.0, %v1783
    %v1785 = vpop.f32.mrf.mxu0
    %1786 = vmatprep.mubr.f32.mxu0 0.0
    %1787 = vmatmul.mubr.f32.gmra.mxu0 %v1651
    %v1788 = vpop.f32.mrf.mxu0
    %v1789 = vadd.f32 0.0, %v1788
    %v1790 = vpop.f32.mrf.mxu0
    %1791 = vmatprep.mubr.f32.mxu0 0.0
    %1792 = vmatmul.mubr.f32.gmra.mxu0 %v1654
    %v1793 = vpop.f32.mrf.mxu0
    %v1794 = vadd.f32 0.0, %v1793
    %v1795 = vpop.f32.mrf.mxu0
    %1796 = vmatprep.mubr.f32.mxu0 0.0
    %1797 = vmatmul.mubr.f32.gmra.mxu0 %v1657
    %v1798 = vpop.f32.mrf.mxu0
    %v1799 = vadd.f32 0.0, %v1798
    %v1800 = vpop.f32.mrf.mxu0
    %1801 = vmatprep.mubr.f32.mxu0 0.0
    %1802 = vmatmul.mubr.f32.gmra.mxu0 %v1660
    %v1803 = vpop.f32.mrf.mxu0
    %v1804 = vadd.f32 0.0, %v1803
    %v1805 = vpop.f32.mrf.mxu0
    %1806 = vdwg.mxu0
    %v1807 = vmul.f32 %v377, %v377
    %v1808 = vmul.f32 %v382, %v382
    %v1809 = vmul.f32 %v387, %v387
    %v1810 = vmul.f32 %v392, %v392
    %v1811 = vmul.f32 %v397, %v397
    %v1812 = vmul.f32 %v402, %v402
    %v1813 = vmul.f32 %v407, %v407
    %v1814 = vmul.f32 %v412, %v412
    %v1815 = vmul.f32 %v417, %v417
    %v1816 = vmul.f32 %v422, %v422
    %v1817 = vmul.f32 %v427, %v427
    %v1818 = vmul.f32 %v432, %v432
    %v1819 = vmul.f32 %v437, %v437
    %v1820 = vmul.f32 %v442, %v442
    %v1821 = vmul.f32 %v447, %v447
    %v1822 = vmul.f32 %v452, %v452
    %v1823 = vmul.f32 %v715, %v715
    %v1824 = vmul.f32 %v720, %v720
    %v1825 = vmul.f32 %v725, %v725
    %v1826 = vmul.f32 %v730, %v730
    %v1827 = vmul.f32 %v735, %v735
    %v1828 = vmul.f32 %v740, %v740
    %v1829 = vmul.f32 %v745, %v745
    %v1830 = vmul.f32 %v750, %v750
    %v1831 = vmul.f32 %v755, %v755
    %v1832 = vmul.f32 %v760, %v760
    %v1833 = vmul.f32 %v765, %v765
    %v1834 = vmul.f32 %v770, %v770
    %v1835 = vmul.f32 %v775, %v775
    %v1836 = vmul.f32 %v780, %v780
    %v1837 = vmul.f32 %v785, %v785
    %v1838 = vmul.f32 %v790, %v790
    %v1839 = vmul.f32 %v377, %v715
    %v1840 = vmul.f32 %v382, %v720
    %v1841 = vmul.f32 %v387, %v725
    %v1842 = vmul.f32 %v392, %v730
    %v1843 = vmul.f32 %v397, %v735
    %v1844 = vmul.f32 %v402, %v740
    %v1845 = vmul.f32 %v407, %v745
    %v1846 = vmul.f32 %v412, %v750
    %v1847 = vmul.f32 %v417, %v755
    %v1848 = vmul.f32 %v422, %v760
    %v1849 = vmul.f32 %v427, %v765
    %v1850 = vmul.f32 %v432, %v770
    %v1851 = vmul.f32 %v437, %v775
    %v1852 = vmul.f32 %v442, %v780
    %v1853 = vmul.f32 %v447, %v785
    %v1854 = vmul.f32 %v452, %v790
    %v1855 = vsub.f32 %v1053, %v1807
    %v1856 = vsub.f32 %v1058, %v1808
    %v1857 = vsub.f32 %v1063, %v1809
    %v1858 = vsub.f32 %v1068, %v1810
    %v1859 = vsub.f32 %v1073, %v1811
    %v1860 = vsub.f32 %v1078, %v1812
    %v1861 = vsub.f32 %v1083, %v1813
    %v1862 = vsub.f32 %v1088, %v1814
    %v1863 = vsub.f32 %v1093, %v1815
    %v1864 = vsub.f32 %v1098, %v1816
    %v1865 = vsub.f32 %v1103, %v1817
    %v1866 = vsub.f32 %v1108, %v1818
    %v1867 = vsub.f32 %v1113, %v1819
    %v1868 = vsub.f32 %v1118, %v1820
    %v1869 = vsub.f32 %v1123, %v1821
    %v1870 = vsub.f32 %v1128, %v1822
    %v1871 = vsub.f32 %v1391, %v1823
    %v1872 = vsub.f32 %v1396, %v1824
    %v1873 = vsub.f32 %v1401, %v1825
    %v1874 = vsub.f32 %v1406, %v1826
    %v1875 = vsub.f32 %v1411, %v1827
    %v1876 = vsub.f32 %v1416, %v1828
    %v1877 = vsub.f32 %v1421, %v1829
    %v1878 = vsub.f32 %v1426, %v1830
    %v1879 = vsub.f32 %v1431, %v1831
    %v1880 = vsub.f32 %v1436, %v1832
    %v1881 = vsub.f32 %v1441, %v1833
    %v1882 = vsub.f32 %v1446, %v1834
    %v1883 = vsub.f32 %v1451, %v1835
    %v1884 = vsub.f32 %v1456, %v1836
    %v1885 = vsub.f32 %v1461, %v1837
    %v1886 = vsub.f32 %v1466, %v1838
    %v1887 = vsub.f32 %v1729, %v1839
    %v1888 = vsub.f32 %v1734, %v1840
    %v1889 = vsub.f32 %v1739, %v1841
    %v1890 = vsub.f32 %v1744, %v1842
    %v1891 = vsub.f32 %v1749, %v1843
    %v1892 = vsub.f32 %v1754, %v1844
    %v1893 = vsub.f32 %v1759, %v1845
    %v1894 = vsub.f32 %v1764, %v1846
    %v1895 = vsub.f32 %v1769, %v1847
    %v1896 = vsub.f32 %v1774, %v1848
    %v1897 = vsub.f32 %v1779, %v1849
    %v1898 = vsub.f32 %v1784, %v1850
    %v1899 = vsub.f32 %v1789, %v1851
    %v1900 = vsub.f32 %v1794, %v1852
    %v1901 = vsub.f32 %v1799, %v1853
    %v1902 = vsub.f32 %v1804, %v1854
    %v1903 = vmul.f32 %v1839, 2.0
    %v1904 = vmul.f32 %v1840, 2.0
    %v1905 = vmul.f32 %v1841, 2.0
    %v1906 = vmul.f32 %v1842, 2.0
    %v1907 = vmul.f32 %v1843, 2.0
    %v1908 = vmul.f32 %v1844, 2.0
    %v1909 = vmul.f32 %v1845, 2.0
    %v1910 = vmul.f32 %v1846, 2.0
    %v1911 = vmul.f32 %v1847, 2.0
    %v1912 = vmul.f32 %v1848, 2.0
    %v1913 = vmul.f32 %v1849, 2.0
    %v1914 = vmul.f32 %v1850, 2.0
    %v1915 = vmul.f32 %v1851, 2.0
    %v1916 = vmul.f32 %v1852, 2.0
    %v1917 = vmul.f32 %v1853, 2.0
    %v1918 = vmul.f32 %v1854, 2.0
    %v1919 = vadd.f32 %v1903, 0.0001
    %v1920 = vadd.f32 %v1904, 0.0001
    %v1921 = vadd.f32 %v1905, 0.0001
    %v1922 = vadd.f32 %v1906, 0.0001
    %v1923 = vadd.f32 %v1907, 0.0001
    %v1924 = vadd.f32 %v1908, 0.0001
    %v1925 = vadd.f32 %v1909, 0.0001
    %v1926 = vadd.f32 %v1910, 0.0001
    %v1927 = vadd.f32 %v1911, 0.0001
    %v1928 = vadd.f32 %v1912, 0.0001
    %v1929 = vadd.f32 %v1913, 0.0001
    %v1930 = vadd.f32 %v1914, 0.0001
    %v1931 = vadd.f32 %v1915, 0.0001
    %v1932 = vadd.f32 %v1916, 0.0001
    %v1933 = vadd.f32 %v1917, 0.0001
    %v1934 = vadd.f32 %v1918, 0.0001
    %v1935 = vmul.f32 %v1887, 2.0
    %v1936 = vmul.f32 %v1888, 2.0
    %v1937 = vmul.f32 %v1889, 2.0
    %v1938 = vmul.f32 %v1890, 2.0
    %v1939 = vmul.f32 %v1891, 2.0
    %v1940 = vmul.f32 %v1892, 2.0
    %v1941 = vmul.f32 %v1893, 2.0
    %v1942 = vmul.f32 %v1894, 2.0
    %v1943 = vmul.f32 %v1895, 2.0
    %v1944 = vmul.f32 %v1896, 2.0
    %v1945 = vmul.f32 %v1897, 2.0
    %v1946 = vmul.f32 %v1898, 2.0
    %v1947 = vmul.f32 %v1899, 2.0
    %v1948 = vmul.f32 %v1900, 2.0
    %v1949 = vmul.f32 %v1901, 2.0
    %v1950 = vmul.f32 %v1902, 2.0
    %v1951 = vadd.f32 %v1935, 0.0009
    %v1952 = vadd.f32 %v1936, 0.0009
    %v1953 = vadd.f32 %v1937, 0.0009
    %v1954 = vadd.f32 %v1938, 0.0009
    %v1955 = vadd.f32 %v1939, 0.0009
    %v1956 = vadd.f32 %v1940, 0.0009
    %v1957 = vadd.f32 %v1941, 0.0009
    %v1958 = vadd.f32 %v1942, 0.0009
    %v1959 = vadd.f32 %v1943, 0.0009
    %v1960 = vadd.f32 %v1944, 0.0009
    %v1961 = vadd.f32 %v1945, 0.0009
    %v1962 = vadd.f32 %v1946, 0.0009
    %v1963 = vadd.f32 %v1947, 0.0009
    %v1964 = vadd.f32 %v1948, 0.0009
    %v1965 = vadd.f32 %v1949, 0.0009
    %v1966 = vadd.f32 %v1950, 0.0009
    %v1967 = vmul.f32 %v1919, %v1951
    %v1968 = vmul.f32 %v1920, %v1952
    %v1969 = vmul.f32 %v1921, %v1953
    %v1970 = vmul.f32 %v1922, %v1954
    %v1971 = vmul.f32 %v1923, %v1955
    %v1972 = vmul.f32 %v1924, %v1956
    %v1973 = vmul.f32 %v1925, %v1957
    %v1974 = vmul.f32 %v1926, %v1958
    %v1975 = vmul.f32 %v1927, %v1959
    %v1976 = vmul.f32 %v1928, %v1960
    %v1977 = vmul.f32 %v1929, %v1961
    %v1978 = vmul.f32 %v1930, %v1962
    %v1979 = vmul.f32 %v1931, %v1963
    %v1980 = vmul.f32 %v1932, %v1964
    %v1981 = vmul.f32 %v1933, %v1965
    %v1982 = vmul.f32 %v1934, %v1966
    %v1983 = vadd.f32 %v1807, %v1823
    %v1984 = vadd.f32 %v1808, %v1824
    %v1985 = vadd.f32 %v1809, %v1825
    %v1986 = vadd.f32 %v1810, %v1826
    %v1987 = vadd.f32 %v1811, %v1827
    %v1988 = vadd.f32 %v1812, %v1828
    %v1989 = vadd.f32 %v1813, %v1829
    %v1990 = vadd.f32 %v1814, %v1830
    %v1991 = vadd.f32 %v1815, %v1831
    %v1992 = vadd.f32 %v1816, %v1832
    %v1993 = vadd.f32 %v1817, %v1833
    %v1994 = vadd.f32 %v1818, %v1834
    %v1995 = vadd.f32 %v1819, %v1835
    %v1996 = vadd.f32 %v1820, %v1836
    %v1997 = vadd.f32 %v1821, %v1837
    %v1998 = vadd.f32 %v1822, %v1838
    %v1999 = vadd.f32 %v1983, 0.0001
    %v2000 = vadd.f32 %v1984, 0.0001
    %v2001 = vadd.f32 %v1985, 0.0001
    %v2002 = vadd.f32 %v1986, 0.0001
    %v2003 = vadd.f32 %v1987, 0.0001
    %v2004 = vadd.f32 %v1988, 0.0001
    %v2005 = vadd.f32 %v1989, 0.0001
    %v2006 = vadd.f32 %v1990, 0.0001
    %v2007 = vadd.f32 %v1991, 0.0001
    %v2008 = vadd.f32 %v1992, 0.0001
    %v2009 = vadd.f32 %v1993, 0.0001
    %v2010 = vadd.f32 %v1994, 0.0001
    %v2011 = vadd.f32 %v1995, 0.0001
    %v2012 = vadd.f32 %v1996, 0.0001
    %v2013 = vadd.f32 %v1997, 0.0001
    %v2014 = vadd.f32 %v1998, 0.0001
    %v2015 = vadd.f32 %v1855, %v1871
    %v2016 = vadd.f32 %v1856, %v1872
    %v2017 = vadd.f32 %v1857, %v1873
    %v2018 = vadd.f32 %v1858, %v1874
    %v2019 = vadd.f32 %v1859, %v1875
    %v2020 = vadd.f32 %v1860, %v1876
    %v2021 = vadd.f32 %v1861, %v1877
    %v2022 = vadd.f32 %v1862, %v1878
    %v2023 = vadd.f32 %v1863, %v1879
    %v2024 = vadd.f32 %v1864, %v1880
    %v2025 = vadd.f32 %v1865, %v1881
    %v2026 = vadd.f32 %v1866, %v1882
    %v2027 = vadd.f32 %v1867, %v1883
    %v2028 = vadd.f32 %v1868, %v1884
    %v2029 = vadd.f32 %v1869, %v1885
    %v2030 = vadd.f32 %v1870, %v1886
    %v2031 = vadd.f32 %v2015, 0.0009
    %v2032 = vadd.f32 %v2016, 0.0009
    %v2033 = vadd.f32 %v2017, 0.0009
    %v2034 = vadd.f32 %v2018, 0.0009
    %v2035 = vadd.f32 %v2019, 0.0009
    %v2036 = vadd.f32 %v2020, 0.0009
    %v2037 = vadd.f32 %v2021, 0.0009
    %v2038 = vadd.f32 %v2022, 0.0009
    %v2039 = vadd.f32 %v2023, 0.0009
    %v2040 = vadd.f32 %v2024, 0.0009
    %v2041 = vadd.f32 %v2025, 0.0009
    %v2042 = vadd.f32 %v2026, 0.0009
    %v2043 = vadd.f32 %v2027, 0.0009
    %v2044 = vadd.f32 %v2028, 0.0009
    %v2045 = vadd.f32 %v2029, 0.0009
    %v2046 = vadd.f32 %v2030, 0.0009
    %v2047 = vmul.f32 %v1999, %v2031
    %v2048 = vmul.f32 %v2000, %v2032
    %v2049 = vmul.f32 %v2001, %v2033
    %v2050 = vmul.f32 %v2002, %v2034
    %v2051 = vmul.f32 %v2003, %v2035
    %v2052 = vmul.f32 %v2004, %v2036
    %v2053 = vmul.f32 %v2005, %v2037
    %v2054 = vmul.f32 %v2006, %v2038
    %v2055 = vmul.f32 %v2007, %v2039
    %v2056 = vmul.f32 %v2008, %v2040
    %v2057 = vmul.f32 %v2009, %v2041
    %v2058 = vmul.f32 %v2010, %v2042
    %v2059 = vmul.f32 %v2011, %v2043
    %v2060 = vmul.f32 %v2012, %v2044
    %v2061 = vmul.f32 %v2013, %v2045
    %v2062 = vmul.f32 %v2014, %v2046
    %v2063 = vrcp.pop %v2047
    %v2064 = vrcp.pop %v2048
    %v2065 = vrcp.pop %v2049
    %v2066 = vrcp.pop %v2050
    %v2067 = vrcp.pop %v2051
    %v2068 = vrcp.pop %v2052
    %v2069 = vrcp.pop %v2053
    %v2070 = vrcp.pop %v2054
    %v2071 = vrcp.pop %v2055
    %v2072 = vrcp.pop %v2056
    %v2073 = vrcp.pop %v2057
    %v2074 = vrcp.pop %v2058
    %v2075 = vrcp.pop %v2059
    %v2076 = vrcp.pop %v2060
    %v2077 = vrcp.pop %v2061
    %v2078 = vrcp.pop %v2062
    %v2079 = vmul.f32 %v1967, %v2063
    %v2080 = vmul.f32 %v1968, %v2064
    %v2081 = vmul.f32 %v1969, %v2065
    %v2082 = vmul.f32 %v1970, %v2066
    %v2083 = vmul.f32 %v1971, %v2067
    %v2084 = vmul.f32 %v1972, %v2068
    %v2085 = vmul.f32 %v1973, %v2069
    %v2086 = vmul.f32 %v1974, %v2070
    %v2087 = vmul.f32 %v1975, %v2071
    %v2088 = vmul.f32 %v1976, %v2072
    %v2089 = vmul.f32 %v1977, %v2073
    %v2090 = vmul.f32 %v1978, %v2074
    %v2091 = vmul.f32 %v1979, %v2075
    %v2092 = vmul.f32 %v1980, %v2076
    %v2093 = vmul.f32 %v1981, %v2077
    %v2094 = vmul.f32 %v1982, %v2078
    %v2095 = vsel %vm261, %v2079, 0.0
    %v2096 = vsel %vm261, %v2080, 0.0
    %v2097 = vadd.f32 %v2095, %v2096
    %v2098 = vsel %vm261, %v2081, 0.0
    %v2099 = vadd.f32 %v2097, %v2098
    %v2100 = vsel %vm261, %v2082, 0.0
    %v2101 = vadd.f32 %v2099, %v2100
    %v2102 = vsel %vm261, %v2083, 0.0
    %v2103 = vadd.f32 %v2101, %v2102
    %v2104 = vsel %vm261, %v2084, 0.0
    %v2105 = vadd.f32 %v2103, %v2104
    %v2106 = vsel %vm261, %v2085, 0.0
    %v2107 = vadd.f32 %v2105, %v2106
    %v2108 = vsel %vm261, %v2086, 0.0
    %v2109 = vadd.f32 %v2107, %v2108
    %v2110 = vsel %vm261, %v2087, 0.0
    %v2111 = vadd.f32 %v2109, %v2110
    %v2112 = vsel %vm261, %v2088, 0.0
    %v2113 = vadd.f32 %v2111, %v2112
    %v2114 = vsel %vm261, %v2089, 0.0
    %v2115 = vadd.f32 %v2113, %v2114
    %v2116 = vsel %vm261, %v2090, 0.0
    %v2117 = vadd.f32 %v2115, %v2116
    %v2118 = vsel %vm261, %v2091, 0.0
    %v2119 = vadd.f32 %v2117, %v2118
    %v2120 = vsel %vm261, %v2092, 0.0
    %v2121 = vadd.f32 %v2119, %v2120
    %v2122 = vsel %vm261, %v2093, 0.0
    %v2123 = vadd.f32 %v2121, %v2122
    %v2124 = vsel %vm261, %v2094, 0.0
    %v2125 = vadd.f32 %v2123, %v2124
    %2126 = vadd.xlane.f32.xlu0 %v2125
    %v2127 = vpop.xlane.xlu0 %2126
    %v2128 = vrot.slane %v2127, 4
    %v2129 = vadd.f32 %v2127, %v2128
    %v2130 = vrot.slane %v2129, 2
    %v2131 = vadd.f32 %v2129, %v2130
    %v2132 = vrot.slane %v2131, 1
    %v2133 = vadd.f32 %v2131, %v2132
    %s2134 = vtos %v2133
    %v2135 = vstv %s2134
    %v2136 = vadd.f32 %v2135, 0.0
    %vm2137 = vcmask 0
    %2138 = vst.msk [vmem:[#allocation2] sm:$0x1] %vm2137, %v2136
    // Predicated region
    $region18: #{tpu_custom_call.1} parent=1 // pred_check
      _
    $region19: #{tpu_custom_call.1} parent=1 // pred_check_branch
      %2140 = sbr.rel (0) target = $region21
    $region20: #{tpu_custom_call.1} parent=1 // pred_region
      %s2142 = ssub.s32 16, 16
      %2143 = vsyncadd [#allocation3], %s2142
      %s2145 = sshll.u32 [#allocation2], 4
      %s2146 = int_to_ptr.vmem [resolvable:$true] %s2145
      %2148 = dma.vmem_to_hbm [thread:$0]  %s2146, 16, %s4, [#allocation3]
    $region21: #{tpu_custom_call.1} parent=1 // pred_fallthru
      _
    // Predicated region
    $region22: #{tpu_custom_call.1} parent=1 // pred_check
      _
    $region23: #{tpu_custom_call.1} parent=1 // pred_check_branch
      %2150 = sbr.rel (0) target = $region25
    $region24: #{tpu_custom_call.1} parent=1 // pred_region
      %2151 = dma.done [#allocation3], 16
    $region25: #{tpu_custom_call.1} parent=1 // pred_fallthru
      _
    %2152 = vsyncpa [#allocation3], 1

</llo_original>
